<compile_context>
chip_gen: v7x
topology: tpu7x:2x2x1
jax: 0.10.0
libtpu: 0.0.40
codegen_flags: <defaults>
</compile_context>

<pallas_src>
import functools

import jax
import jax.numpy as jnp
from jax.experimental import pallas as pl
from jax.experimental.pallas import tpu as pltpu


_VMEM_LIMIT = 48 * 1024 * 1024  # above the 16/32 MiB scoped defaults, < v7x's 64 MiB


def _round_up(x, m):
    return ((x + m - 1) // m) * m


@functools.lru_cache(maxsize=None)
def _single_buffer_ok():
    """Probe once whether BlockSpec(pipeline_mode=pl.Buffered(1)) lowers here."""
    def _k(x_ref, o_ref):
        o_ref[...] = x_ref[...] * 2.0

    try:
        spec = pl.BlockSpec((8, 128), lambda i: (0, 0),
                            pipeline_mode=pl.Buffered(1))
        fn = pl.pallas_call(
            _k,
            out_shape=jax.ShapeDtypeStruct((8, 128), jnp.float32),
            grid=(1,),
            in_specs=[spec],
            out_specs=pl.BlockSpec((8, 128), lambda i: (0, 0)),
        )
        jax.block_until_ready(fn(jnp.ones((8, 128), jnp.float32)))
        return True
    except Exception:
        return False


# ----------------------------------------------------------------------------
# Fused LSTM layer kernel: per grid step, one (batch block, time chunk).
# Input projection x@W_ih + b and the recurrence h@W_hh both happen in-kernel,
# so no (T,B,4H) intermediate ever touches HBM.
# ----------------------------------------------------------------------------
def _lstm_layer_kernel(x_ref, w_ih_ref, w_hh_ref, b_ref, h_out_ref,
                       h_scr, c_scr, *, unroll):
    # New batch block -> reset the recurrent state carried in scratch.
    @pl.when(pl.program_id(1) == 0)
    def _():
        h_scr[...] = jnp.zeros_like(h_scr)
        c_scr[...] = jnp.zeros_like(c_scr)

    Tc, Bb, _ = x_ref.shape
    H = h_scr.shape[-1]

    w_ih = w_ih_ref[...]                       # (D, 4H)  bf16, resident
    w_hh = w_hh_ref[...]                       # (H, 4H)  bf16, resident
    # Hoist the bias broadcast out of the loop (broadcast_in_dim is not CSE'd).
    bias = jnp.broadcast_to(b_ref[...], (Bb, 4 * H))

    def step(i, carry):
        h_prev, c_prev = carry                 # h bf16 (Bb,H), c f32 (Bb,H)
        x_t = x_ref[i]
        if x_t.dtype != jnp.bfloat16:
            x_t = x_t.astype(jnp.bfloat16)
        # Two MXU pushes, f32 accumulation; gate elementwise math stays f32
        # (no bf16 VPU/EUP path on v5e).
        gates = (jnp.dot(x_t, w_ih, preferred_element_type=jnp.float32)
                 + jnp.dot(h_prev, w_hh, preferred_element_type=jnp.float32)
                 + bias)
        # NOTE: slices are lane-aligned whenever H % 128 == 0 (pad H for prod).
        # sigmoid(z) = 0.5*tanh(0.5*z) + 0.5 -> one EUP push instead of two.
        i_g = 0.5 * jnp.tanh(0.5 * gates[:, 0 * H:1 * H]) + 0.5
        f_g = 0.5 * jnp.tanh(0.5 * gates[:, 1 * H:2 * H]) + 0.5
        g_g = jnp.tanh(gates[:, 2 * H:3 * H])
        o_g = 0.5 * jnp.tanh(0.5 * gates[:, 3 * H:4 * H]) + 0.5
        c_new = f_g * c_prev + i_g * g_g
        # One bf16 cast per step, reused for the writeback AND the next matmul LHS.
        h_new = (o_g * jnp.tanh(c_new)).astype(jnp.bfloat16)
        h_out_ref[i] = h_new
        return h_new, c_new

    h_f, c_f = jax.lax.fori_loop(0, Tc, step, (h_scr[...], c_scr[...]),
                                 unroll=unroll)
    h_scr[...] = h_f
    c_scr[...] = c_f


def lstm_layer(x, w_ih, w_hh, bias, *, time_chunk=16, batch_tile=None):
    """One LSTM layer.  x: (T, B, D) time-major -> (T, B, H) bfloat16."""
    T, B, D = x.shape
    H = w_hh.shape[0]
    G = 4 * H

    Tc = max(1, min(time_chunk, T))
    T_pad = _round_up(T, Tc)
    if T_pad != T:
        x = jnp.pad(x, ((0, T_pad - T), (0, 0), (0, 0)))

    Bb = B if batch_tile is None else max(1, min(batch_tile, B))
    if B % Bb != 0:
        Bb = B

    w_kwargs = {}
    if _single_buffer_ok():
        # Constant index_map => never re-DMA'd; single-buffer to halve the
        # resident weight VMEM (matters for v7x's 64 MiB VMEM at realistic H).
        w_kwargs["pipeline_mode"] = pl.Buffered(1)

    unroll = Tc if Tc <= 8 else 4

    flops = 2 * T_pad * B * (D + H) * G
    transcendentals = 5 * T_pad * B * H          # 4 gate tanh + tanh(c)
    bytes_accessed = (T_pad * B * D * x.dtype.itemsize   # x read
                      + (D + H) * G * 2 + G * 4          # weights + bias
                      + T_pad * B * H * 2)               # bf16 h writeback

    h_seq = pl.pallas_call(
        functools.partial(_lstm_layer_kernel, unroll=unroll),
        out_shape=jax.ShapeDtypeStruct((T_pad, B, H), jnp.bfloat16),
        grid=(B // Bb, T_pad // Tc),
        in_specs=[
            pl.BlockSpec((Tc, Bb, D), lambda b, t: (t, b, 0)),
            pl.BlockSpec((D, G), lambda b, t: (0, 0), **w_kwargs),
            pl.BlockSpec((H, G), lambda b, t: (0, 0), **w_kwargs),
            pl.BlockSpec((1, G), lambda b, t: (0, 0), **w_kwargs),
        ],
        out_specs=pl.BlockSpec((Tc, Bb, H), lambda b, t: (t, b, 0)),
        scratch_shapes=[
            pltpu.VMEM((Bb, H), jnp.bfloat16),   # h carry (matmul LHS dtype)
            pltpu.VMEM((Bb, H), jnp.float32),    # c carry (full precision)
        ],
        compiler_params=pltpu.CompilerParams(
            # batch blocks are independent (megacore split on v7x);
            # the time axis is the true recurrence.
            dimension_semantics=("parallel", "arbitrary"),
            vmem_limit_bytes=_VMEM_LIMIT,
        ),
        cost_estimate=pl.CostEstimate(
            flops=flops, transcendentals=transcendentals,
            bytes_accessed=bytes_accessed),
    )(x, w_ih.astype(jnp.bfloat16), w_hh.astype(jnp.bfloat16),
      bias.astype(jnp.float32))
    return h_seq[:T]


# ----------------------------------------------------------------------------
# Tiled linear kernel for the decoder:  out = act(x @ w + b)
# Column tiles on the SLOW grid axis so each W/bias column block is DMA'd
# exactly once; the (smaller, bf16) activation slab is the re-streamed operand.
# ----------------------------------------------------------------------------
def _linear_kernel(x_ref, w_ref, b_ref, o_ref, *, activation):
    x = x_ref[...]
    if x.dtype != jnp.bfloat16:
        x = x.astype(jnp.bfloat16)
    y = jnp.dot(x, w_ref[...], preferred_element_type=jnp.float32)
    y = y + b_ref[...]
    if activation == "tanh":
        y = jnp.tanh(y)
    o_ref[...] = y.astype(o_ref.dtype)


def linear(x, w, b, activation=None, out_dtype=jnp.float32,
           row_tile=256, col_tile=512):
    """x: (N, K), w: (K, M), b: (1, M)  ->  (N, M) out_dtype."""
    N, K = x.shape
    M = w.shape[1]

    rt = min(row_tile, _round_up(max(N, 1), 8))
    Np = _round_up(N, rt)
    ct = col_tile if M > col_tile else M
    Mp = _round_up(M, ct)

    x_p = x
    if Np != N:
        x_p = jnp.pad(x_p, ((0, Np - N), (0, 0)))
    w_p = w.astype(jnp.bfloat16)
    b_p = b.astype(jnp.float32)
    if Mp != M:
        w_p = jnp.pad(w_p, ((0, 0), (0, Mp - M)))
        b_p = jnp.pad(b_p, ((0, 0), (0, Mp - M)))

    flops = 2 * Np * K * Mp
    bytes_accessed = (Np * K * x_p.dtype.itemsize + K * Mp * 2
                      + Np * Mp * jnp.dtype(out_dtype).itemsize)

    out = pl.pallas_call(
        functools.partial(_linear_kernel, activation=activation),
        out_shape=jax.ShapeDtypeStruct((Np, Mp), out_dtype),
        grid=(Mp // ct, Np // rt),            # cols slow, rows fast
        in_specs=[
            pl.BlockSpec((rt, K), lambda j, i: (i, 0)),
            pl.BlockSpec((K, ct), lambda j, i: (0, j)),   # constant over rows
            pl.BlockSpec((1, ct), lambda j, i: (0, j)),
        ],
        out_specs=pl.BlockSpec((rt, ct), lambda j, i: (i, j)),
        compiler_params=pltpu.CompilerParams(
            dimension_semantics=("parallel", "parallel"),
            vmem_limit_bytes=_VMEM_LIMIT),
        cost_estimate=pl.CostEstimate(
            flops=flops,
            transcendentals=Np * Mp if activation == "tanh" else 0,
            bytes_accessed=bytes_accessed),
    )(x_p, w_p, b_p)
    return out[:N, :M]


# ----------------------------------------------------------------------------
# Parameters & full forward.
# ----------------------------------------------------------------------------
def init_lstm_params(key, d_input, d_hidden, d_output, n_layer):
    """PyTorch-style uniform(-1/sqrt(H), 1/sqrt(H)) init; weights kept in bf16."""
    params = {"layers": []}
    bound = 1.0 / jnp.sqrt(jnp.float32(d_hidden))
    for layer in range(n_layer):
        d_in = d_input if layer == 0 else d_hidden
        key, k1, k2, k3, k4 = jax.random.split(key, 5)
        w_ih = jax.random.uniform(k1, (d_in, 4 * d_hidden), jnp.float32, -bound, bound)
        w_hh = jax.random.uniform(k2, (d_hidden, 4 * d_hidden), jnp.float32, -bound, bound)
        b_ih = jax.random.uniform(k3, (4 * d_hidden,), jnp.float32, -bound, bound)
        b_hh = jax.random.uniform(k4, (4 * d_hidden,), jnp.float32, -bound, bound)
        params["layers"].append({
            "w_ih": w_ih.astype(jnp.bfloat16),
            "w_hh": w_hh.astype(jnp.bfloat16),
            "bias": (b_ih + b_hh)[None, :].astype(jnp.float32),
        })
    key, k5, k6 = jax.random.split(key, 3)
    params["w_dec"] = jax.random.uniform(
        k5, (d_hidden, d_output), jnp.float32, -bound, bound).astype(jnp.bfloat16)
    params["b_dec"] = jax.random.uniform(
        k6, (1, d_output), jnp.float32, -bound, bound).astype(jnp.float32)
    return params


@functools.partial(jax.jit, static_argnames=("time_chunk", "batch_tile"))
def lstm_forward(params, src, time_chunk=16, batch_tile=None):
    """src: (B, T, d_input) batch-first like the PyTorch module -> (B, T, d_output)."""
    B, T, _ = src.shape
    # TODO(synk): fold this transpose (and the final one) into the kernel
    # BlockSpecs for production shapes.
    x = jnp.transpose(src, (1, 0, 2))                      # (T, B, D) time-major

    for lp in params["layers"]:
        x = lstm_layer(x, lp["w_ih"], lp["w_hh"], lp["bias"],
                       time_chunk=time_chunk, batch_tile=batch_tile)  # (T,B,H) bf16

    H = x.shape[-1]
    dec = linear(x.reshape(T * B, H), params["w_dec"], params["b_dec"],
                 activation="tanh")                        # (T*B, d_out) f32
    return jnp.transpose(dec.reshape(T, B, -1), (1, 0, 2))  # (B, T, d_out)


# ----------------------------------------------------------------------------
# Pure-JAX reference (same bf16 weight values, full f32 math) for validation.
# ----------------------------------------------------------------------------
def _reference_forward(params, src):
    x = jnp.transpose(src, (1, 0, 2)).astype(jnp.float32)  # (T, B, D)
    for lp in params["layers"]:
        w_ih = lp["w_ih"].astype(jnp.float32)
        w_hh = lp["w_hh"].astype(jnp.float32)
        b = lp["bias"].astype(jnp.float32)
        T, B, _ = x.shape
        H = w_hh.shape[0]

        def step(carry, x_t):
            h, c = carry
            gates = x_t @ w_ih + h @ w_hh + b
            i = jax.nn.sigmoid(gates[:, 0 * H:1 * H])
            f = jax.nn.sigmoid(gates[:, 1 * H:2 * H])
            g = jnp.tanh(gates[:, 2 * H:3 * H])
            o = jax.nn.sigmoid(gates[:, 3 * H:4 * H])
            c = f * c + i * g
            h = o * jnp.tanh(c)
            return (h, c), h

        zero = jnp.zeros((B, H), jnp.float32)
        _, hs = jax.lax.scan(step, (zero, zero), x)
        x = hs
    dec = jnp.tanh(x @ params["w_dec"].astype(jnp.float32) + params["b_dec"])
    return jnp.transpose(dec, (1, 0, 2))


if __name__ == "__main__":
    # Small shapes consistent with the module's forward.
    B, T = 2, 8
    d_input, d_hidden, d_output, n_layer = 4, 32, 3, 2

    key = jax.random.PRNGKey(0)
    key, pkey, xkey = jax.random.split(key, 3)
    params = init_lstm_params(pkey, d_input, d_hidden, d_output, n_layer)
    src = jax.random.normal(xkey, (B, T, d_input), jnp.float32)

    _single_buffer_ok()  # prime the Buffered(1) probe outside of jit tracing

    # time_chunk=4 -> grid of 2 time chunks per layer: exercises the h/c carry.
    out = lstm_forward(params, src, time_chunk=4)
    out = jax.block_until_ready(out)
    assert out.shape == (B, T, d_output), out.shape

    ref = _reference_forward(params, src)
    err = float(jnp.max(jnp.abs(out - ref)))
    assert err < 5e-2, f"max abs error {err}"
    print("KERNEL_OK")
</pallas_src>

<mosaic_0001>
module attributes {stable_mosaic.version = 11 : i64} {
  func.func @_k(%arg0: i32, %arg1: memref<8x128xf32, #tpu.memory_space<vmem>>, %arg2: memref<8x128xf32, #tpu.memory_space<vmem>>) attributes {dimension_semantics = [#tpu.dimension_semantics<arbitrary>], iteration_bounds = array<i64: 1>, scalar_prefetch = 0 : i64, scratch_operands = 0 : i64, tpu.core_type = #tpu.core_type<tc>, window_params = [{pipeline_mode = #tpu.pipeline_mode<synchronous>, transform_indices = @transform_0, window_bounds = array<i64: 8, 128>}, {pipeline_mode = #tpu.pipeline_mode<synchronous>, transform_indices = @transform_1, window_bounds = array<i64: 8, 128>}]} {
    %c0 = arith.constant 0 : index
    %c0_0 = arith.constant 0 : index
    %0 = vector.load %arg1[%c0, %c0_0] : memref<8x128xf32, #tpu.memory_space<vmem>>, vector<8x128xf32>
    %cst = arith.constant 2.000000e+00 : f32
    %1 = vector.broadcast %cst : f32 to vector<8x128xf32>
    %2 = arith.mulf %0, %1 : vector<8x128xf32>
    %c0_1 = arith.constant 0 : index
    %c0_2 = arith.constant 0 : index
    %3 = vector.load %arg2[%c0_1, %c0_2] : memref<8x128xf32, #tpu.memory_space<vmem>>, vector<8x128xf32>
    tpu.vector_store %arg2[%c0_1, %c0_2], %2 {strides = array<i32>} : memref<8x128xf32, #tpu.memory_space<vmem>>, vector<8x128xf32>,
    return
  }
  func.func @transform_0(%arg0: i32) -> (i32, i32) {
    %c0_i32 = arith.constant 0 : i32
    %c0_i32_0 = arith.constant 0 : i32
    %c0_i32_1 = arith.constant 0 : i32
    return %c0_i32, %c0_i32_0 : i32, i32
  }
  func.func @transform_1(%arg0: i32) -> (i32, i32) {
    %c0_i32 = arith.constant 0 : i32
    %c0_i32_0 = arith.constant 0 : i32
    %c0_i32_1 = arith.constant 0 : i32
    return %c0_i32, %c0_i32_0 : i32, i32
  }
}

module attributes {stable_mosaic.version = 11 : i64} {
  func.func @_lstm_layer_kernel(%arg0: i32, %arg1: i32, %arg2: memref<4x2x32xbf16, #tpu.memory_space<vmem>>, %arg3: memref<32x128xbf16, #tpu.memory_space<vmem>>, %arg4: memref<32x128xbf16, #tpu.memory_space<vmem>>, %arg5: memref<1x128xf32, #tpu.memory_space<vmem>>, %arg6: memref<4x2x32xbf16, #tpu.memory_space<vmem>>, %arg7: memref<2x32xbf16, #tpu.memory_space<vmem>>, %arg8: memref<2x32xf32, #tpu.memory_space<vmem>>) attributes {dimension_semantics = [#tpu.dimension_semantics<parallel>, #tpu.dimension_semantics<arbitrary>], iteration_bounds = array<i64: 1, 2>, scalar_prefetch = 0 : i64, scratch_operands = 2 : i64, tpu.core_type = #tpu.core_type<tc>, window_params = [{transform_indices = @transform_0, window_bounds = array<i64: 4, 2, 32>}, {pipeline_mode = #tpu.pipeline_mode<synchronous>, transform_indices = @transform_1, window_bounds = array<i64: 32, 128>}, {pipeline_mode = #tpu.pipeline_mode<synchronous>, transform_indices = @transform_2, window_bounds = array<i64: 32, 128>}, {pipeline_mode = #tpu.pipeline_mode<synchronous>, transform_indices = @transform_3, window_bounds = array<i64: 1, 128>}, {transform_indices = @transform_4, window_bounds = array<i64: 4, 2, 32>}]} {
    %c0_i32 = arith.constant 0 : i32
    %0 = arith.cmpi eq, %arg1, %c0_i32 : i32
    %1 = arith.extui %0 : i1 to i32
    %c0_i32_0 = arith.constant 0 : i32
    %2 = arith.cmpi ne, %1, %c0_i32_0 : i32
    scf.if %2 {
      %cst_74 = arith.constant 0.000000e+00 : bf16
      %184 = vector.broadcast %cst_74 : bf16 to vector<2x32xbf16>
      %c0_75 = arith.constant 0 : index
      %c0_76 = arith.constant 0 : index
      %185 = vector.load %arg7[%c0_75, %c0_76] : memref<2x32xbf16, #tpu.memory_space<vmem>>, vector<2x32xbf16>
      tpu.vector_store %arg7[%c0_75, %c0_76], %184 {strides = array<i32>} : memref<2x32xbf16, #tpu.memory_space<vmem>>, vector<2x32xbf16>,
      %cst_77 = arith.constant 0.000000e+00 : f32
      %186 = vector.broadcast %cst_77 : f32 to vector<2x32xf32>
      %c0_78 = arith.constant 0 : index
      %c0_79 = arith.constant 0 : index
      %187 = vector.load %arg8[%c0_78, %c0_79] : memref<2x32xf32, #tpu.memory_space<vmem>>, vector<2x32xf32>
      tpu.vector_store %arg8[%c0_78, %c0_79], %186 {strides = array<i32>} : memref<2x32xf32, #tpu.memory_space<vmem>>, vector<2x32xf32>,
    } else {
    }
    %c0 = arith.constant 0 : index
    %c0_1 = arith.constant 0 : index
    %3 = vector.load %arg3[%c0, %c0_1] : memref<32x128xbf16, #tpu.memory_space<vmem>>, vector<32x128xbf16>
    %c0_2 = arith.constant 0 : index
    %c0_3 = arith.constant 0 : index
    %4 = vector.load %arg4[%c0_2, %c0_3] : memref<32x128xbf16, #tpu.memory_space<vmem>>, vector<32x128xbf16>
    %c0_4 = arith.constant 0 : index
    %c0_5 = arith.constant 0 : index
    %5 = vector.load %arg5[%c0_4, %c0_5] : memref<1x128xf32, #tpu.memory_space<vmem>>, vector<1x128xf32>
    %6 = vector.shape_cast %5 : vector<1x128xf32> to vector<1x128xf32>
    %7 = vector.broadcast %6 : vector<1x128xf32> to vector<2x128xf32>
    %c0_6 = arith.constant 0 : index
    %c0_7 = arith.constant 0 : index
    %8 = vector.load %arg7[%c0_6, %c0_7] : memref<2x32xbf16, #tpu.memory_space<vmem>>, vector<2x32xbf16>
    %c0_8 = arith.constant 0 : index
    %c0_9 = arith.constant 0 : index
    %9 = vector.load %arg8[%c0_8, %c0_9] : memref<2x32xf32, #tpu.memory_space<vmem>>, vector<2x32xf32>
    %c0_i32_10 = arith.constant 0 : i32
    %10 = arith.index_cast %c0_i32_10 : i32 to index
    %c0_11 = arith.constant 0 : index
    %c0_12 = arith.constant 0 : index
    %11 = vector.load %arg2[%10, %c0_11, %c0_12] : memref<4x2x32xbf16, #tpu.memory_space<vmem>>, vector<1x2x32xbf16>
    %12 = vector.shape_cast %11 : vector<1x2x32xbf16> to vector<2x32xbf16>
    %cst = arith.constant dense<0.000000e+00> : vector<2x128xf32>
    %13 = tpu.matmul %12, %3, %cst {dimension_numbers = #tpu.dot_dimension_numbers<[1], [0], [0], [1], [0, 0, 1, 1], [], []>} : vector<2x32xbf16>, vector<32x128xbf16>, vector<2x128xf32> -> vector<2x128xf32>
    %cst_13 = arith.constant dense<0.000000e+00> : vector<2x128xf32>
    %14 = tpu.matmul %8, %4, %cst_13 {dimension_numbers = #tpu.dot_dimension_numbers<[1], [0], [0], [1], [0, 0, 1, 1], [], []>} : vector<2x32xbf16>, vector<32x128xbf16>, vector<2x128xf32> -> vector<2x128xf32>
    %15 = arith.addf %13, %14 : vector<2x128xf32>
    %16 = arith.addf %15, %7 : vector<2x128xf32>
    %17 = vector.extract_strided_slice %16 {offsets = [0, 0], sizes = [2, 32], strides = [1, 1]} : vector<2x128xf32> to vector<2x32xf32>
    %cst_14 = arith.constant 5.000000e-01 : f32
    %18 = vector.broadcast %cst_14 : f32 to vector<2x32xf32>
    %19 = arith.mulf %18, %17 : vector<2x32xf32>
    %20 = math.tanh %19 : vector<2x32xf32>
    %cst_15 = arith.constant 5.000000e-01 : f32
    %21 = vector.broadcast %cst_15 : f32 to vector<2x32xf32>
    %22 = arith.mulf %21, %20 : vector<2x32xf32>
    %cst_16 = arith.constant 5.000000e-01 : f32
    %23 = vector.broadcast %cst_16 : f32 to vector<2x32xf32>
    %24 = arith.addf %22, %23 : vector<2x32xf32>
    %25 = vector.extract_strided_slice %16 {offsets = [0, 32], sizes = [2, 32], strides = [1, 1]} : vector<2x128xf32> to vector<2x32xf32>
    %cst_17 = arith.constant 5.000000e-01 : f32
    %26 = vector.broadcast %cst_17 : f32 to vector<2x32xf32>
    %27 = arith.mulf %26, %25 : vector<2x32xf32>
    %28 = math.tanh %27 : vector<2x32xf32>
    %cst_18 = arith.constant 5.000000e-01 : f32
    %29 = vector.broadcast %cst_18 : f32 to vector<2x32xf32>
    %30 = arith.mulf %29, %28 : vector<2x32xf32>
    %cst_19 = arith.constant 5.000000e-01 : f32
    %31 = vector.broadcast %cst_19 : f32 to vector<2x32xf32>
    %32 = arith.addf %30, %31 : vector<2x32xf32>
    %33 = vector.extract_strided_slice %16 {offsets = [0, 64], sizes = [2, 32], strides = [1, 1]} : vector<2x128xf32> to vector<2x32xf32>
    %34 = math.tanh %33 : vector<2x32xf32>
    %35 = vector.extract_strided_slice %16 {offsets = [0, 96], sizes = [2, 32], strides = [1, 1]} : vector<2x128xf32> to vector<2x32xf32>
    %cst_20 = arith.constant 5.000000e-01 : f32
    %36 = vector.broadcast %cst_20 : f32 to vector<2x32xf32>
    %37 = arith.mulf %36, %35 : vector<2x32xf32>
    %38 = math.tanh %37 : vector<2x32xf32>
    %cst_21 = arith.constant 5.000000e-01 : f32
    %39 = vector.broadcast %cst_21 : f32 to vector<2x32xf32>
    %40 = arith.mulf %39, %38 : vector<2x32xf32>
    %cst_22 = arith.constant 5.000000e-01 : f32
    %41 = vector.broadcast %cst_22 : f32 to vector<2x32xf32>
    %42 = arith.addf %40, %41 : vector<2x32xf32>
    %43 = arith.mulf %32, %9 : vector<2x32xf32>
    %44 = arith.mulf %24, %34 : vector<2x32xf32>
    %45 = arith.addf %43, %44 : vector<2x32xf32>
    %46 = math.tanh %45 : vector<2x32xf32>
    %47 = arith.mulf %42, %46 : vector<2x32xf32>
    %48 = arith.truncf %47 : vector<2x32xf32> to vector<2x32xbf16>
    %49 = arith.index_cast %c0_i32_10 : i32 to index
    %c0_23 = arith.constant 0 : index
    %c0_24 = arith.constant 0 : index
    %50 = vector.load %arg6[%49, %c0_23, %c0_24] : memref<4x2x32xbf16, #tpu.memory_space<vmem>>, vector<1x2x32xbf16>
    %51 = vector.shape_cast %50 : vector<1x2x32xbf16> to vector<2x32xbf16>
    %52 = vector.shape_cast %48 : vector<2x32xbf16> to vector<1x2x32xbf16>
    tpu.vector_store %arg6[%49, %c0_23, %c0_24], %52 {strides = array<i32>} : memref<4x2x32xbf16, #tpu.memory_space<vmem>>, vector<1x2x32xbf16>,
    %c1_i32 = arith.constant 1 : i32
    %53 = arith.index_cast %c1_i32 : i32 to index
    %c0_25 = arith.constant 0 : index
    %c0_26 = arith.constant 0 : index
    %54 = vector.load %arg2[%53, %c0_25, %c0_26] : memref<4x2x32xbf16, #tpu.memory_space<vmem>>, vector<1x2x32xbf16>
    %55 = vector.shape_cast %54 : vector<1x2x32xbf16> to vector<2x32xbf16>
    %cst_27 = arith.constant dense<0.000000e+00> : vector<2x128xf32>
    %56 = tpu.matmul %55, %3, %cst_27 {dimension_numbers = #tpu.dot_dimension_numbers<[1], [0], [0], [1], [0, 0, 1, 1], [], []>} : vector<2x32xbf16>, vector<32x128xbf16>, vector<2x128xf32> -> vector<2x128xf32>
    %cst_28 = arith.constant dense<0.000000e+00> : vector<2x128xf32>
    %57 = tpu.matmul %48, %4, %cst_28 {dimension_numbers = #tpu.dot_dimension_numbers<[1], [0], [0], [1], [0, 0, 1, 1], [], []>} : vector<2x32xbf16>, vector<32x128xbf16>, vector<2x128xf32> -> vector<2x128xf32>
    %58 = arith.addf %56, %57 : vector<2x128xf32>
    %59 = arith.addf %58, %7 : vector<2x128xf32>
    %60 = vector.extract_strided_slice %59 {offsets = [0, 0], sizes = [2, 32], strides = [1, 1]} : vector<2x128xf32> to vector<2x32xf32>
    %cst_29 = arith.constant 5.000000e-01 : f32
    %61 = vector.broadcast %cst_29 : f32 to vector<2x32xf32>
    %62 = arith.mulf %61, %60 : vector<2x32xf32>
    %63 = math.tanh %62 : vector<2x32xf32>
    %cst_30 = arith.constant 5.000000e-01 : f32
    %64 = vector.broadcast %cst_30 : f32 to vector<2x32xf32>
    %65 = arith.mulf %64, %63 : vector<2x32xf32>
    %cst_31 = arith.constant 5.000000e-01 : f32
    %66 = vector.broadcast %cst_31 : f32 to vector<2x32xf32>
    %67 = arith.addf %65, %66 : vector<2x32xf32>
    %68 = vector.extract_strided_slice %59 {offsets = [0, 32], sizes = [2, 32], strides = [1, 1]} : vector<2x128xf32> to vector<2x32xf32>
    %cst_32 = arith.constant 5.000000e-01 : f32
    %69 = vector.broadcast %cst_32 : f32 to vector<2x32xf32>
    %70 = arith.mulf %69, %68 : vector<2x32xf32>
    %71 = math.tanh %70 : vector<2x32xf32>
    %cst_33 = arith.constant 5.000000e-01 : f32
    %72 = vector.broadcast %cst_33 : f32 to vector<2x32xf32>
    %73 = arith.mulf %72, %71 : vector<2x32xf32>
    %cst_34 = arith.constant 5.000000e-01 : f32
    %74 = vector.broadcast %cst_34 : f32 to vector<2x32xf32>
    %75 = arith.addf %73, %74 : vector<2x32xf32>
    %76 = vector.extract_strided_slice %59 {offsets = [0, 64], sizes = [2, 32], strides = [1, 1]} : vector<2x128xf32> to vector<2x32xf32>
    %77 = math.tanh %76 : vector<2x32xf32>
    %78 = vector.extract_strided_slice %59 {offsets = [0, 96], sizes = [2, 32], strides = [1, 1]} : vector<2x128xf32> to vector<2x32xf32>
    %cst_35 = arith.constant 5.000000e-01 : f32
    %79 = vector.broadcast %cst_35 : f32 to vector<2x32xf32>
    %80 = arith.mulf %79, %78 : vector<2x32xf32>
    %81 = math.tanh %80 : vector<2x32xf32>
    %cst_36 = arith.constant 5.000000e-01 : f32
    %82 = vector.broadcast %cst_36 : f32 to vector<2x32xf32>
    %83 = arith.mulf %82, %81 : vector<2x32xf32>
    %cst_37 = arith.constant 5.000000e-01 : f32
    %84 = vector.broadcast %cst_37 : f32 to vector<2x32xf32>
    %85 = arith.addf %83, %84 : vector<2x32xf32>
    %86 = arith.mulf %75, %45 : vector<2x32xf32>
    %87 = arith.mulf %67, %77 : vector<2x32xf32>
    %88 = arith.addf %86, %87 : vector<2x32xf32>
    %89 = math.tanh %88 : vector<2x32xf32>
    %90 = arith.mulf %85, %89 : vector<2x32xf32>
    %91 = arith.truncf %90 : vector<2x32xf32> to vector<2x32xbf16>
    %92 = arith.index_cast %c1_i32 : i32 to index
    %c0_38 = arith.constant 0 : index
    %c0_39 = arith.constant 0 : index
    %93 = vector.load %arg6[%92, %c0_38, %c0_39] : memref<4x2x32xbf16, #tpu.memory_space<vmem>>, vector<1x2x32xbf16>
    %94 = vector.shape_cast %93 : vector<1x2x32xbf16> to vector<2x32xbf16>
    %95 = vector.shape_cast %91 : vector<2x32xbf16> to vector<1x2x32xbf16>
    tpu.vector_store %arg6[%92, %c0_38, %c0_39], %95 {strides = array<i32>} : memref<4x2x32xbf16, #tpu.memory_space<vmem>>, vector<1x2x32xbf16>,
    %c2_i32 = arith.constant 2 : i32
    %96 = arith.index_cast %c2_i32 : i32 to index
    %c0_40 = arith.constant 0 : index
    %c0_41 = arith.constant 0 : index
    %97 = vector.load %arg2[%96, %c0_40, %c0_41] : memref<4x2x32xbf16, #tpu.memory_space<vmem>>, vector<1x2x32xbf16>
    %98 = vector.shape_cast %97 : vector<1x2x32xbf16> to vector<2x32xbf16>
    %cst_42 = arith.constant dense<0.000000e+00> : vector<2x128xf32>
    %99 = tpu.matmul %98, %3, %cst_42 {dimension_numbers = #tpu.dot_dimension_numbers<[1], [0], [0], [1], [0, 0, 1, 1], [], []>} : vector<2x32xbf16>, vector<32x128xbf16>, vector<2x128xf32> -> vector<2x128xf32>
    %cst_43 = arith.constant dense<0.000000e+00> : vector<2x128xf32>
    %100 = tpu.matmul %91, %4, %cst_43 {dimension_numbers = #tpu.dot_dimension_numbers<[1], [0], [0], [1], [0, 0, 1, 1], [], []>} : vector<2x32xbf16>, vector<32x128xbf16>, vector<2x128xf32> -> vector<2x128xf32>
    %101 = arith.addf %99, %100 : vector<2x128xf32>
    %102 = arith.addf %101, %7 : vector<2x128xf32>
    %103 = vector.extract_strided_slice %102 {offsets = [0, 0], sizes = [2, 32], strides = [1, 1]} : vector<2x128xf32> to vector<2x32xf32>
    %cst_44 = arith.constant 5.000000e-01 : f32
    %104 = vector.broadcast %cst_44 : f32 to vector<2x32xf32>
    %105 = arith.mulf %104, %103 : vector<2x32xf32>
    %106 = math.tanh %105 : vector<2x32xf32>
    %cst_45 = arith.constant 5.000000e-01 : f32
    %107 = vector.broadcast %cst_45 : f32 to vector<2x32xf32>
    %108 = arith.mulf %107, %106 : vector<2x32xf32>
    %cst_46 = arith.constant 5.000000e-01 : f32
    %109 = vector.broadcast %cst_46 : f32 to vector<2x32xf32>
    %110 = arith.addf %108, %109 : vector<2x32xf32>
    %111 = vector.extract_strided_slice %102 {offsets = [0, 32], sizes = [2, 32], strides = [1, 1]} : vector<2x128xf32> to vector<2x32xf32>
    %cst_47 = arith.constant 5.000000e-01 : f32
    %112 = vector.broadcast %cst_47 : f32 to vector<2x32xf32>
    %113 = arith.mulf %112, %111 : vector<2x32xf32>
    %114 = math.tanh %113 : vector<2x32xf32>
    %cst_48 = arith.constant 5.000000e-01 : f32
    %115 = vector.broadcast %cst_48 : f32 to vector<2x32xf32>
    %116 = arith.mulf %115, %114 : vector<2x32xf32>
    %cst_49 = arith.constant 5.000000e-01 : f32
    %117 = vector.broadcast %cst_49 : f32 to vector<2x32xf32>
    %118 = arith.addf %116, %117 : vector<2x32xf32>
    %119 = vector.extract_strided_slice %102 {offsets = [0, 64], sizes = [2, 32], strides = [1, 1]} : vector<2x128xf32> to vector<2x32xf32>
    %120 = math.tanh %119 : vector<2x32xf32>
    %121 = vector.extract_strided_slice %102 {offsets = [0, 96], sizes = [2, 32], strides = [1, 1]} : vector<2x128xf32> to vector<2x32xf32>
    %cst_50 = arith.constant 5.000000e-01 : f32
    %122 = vector.broadcast %cst_50 : f32 to vector<2x32xf32>
    %123 = arith.mulf %122, %121 : vector<2x32xf32>
    %124 = math.tanh %123 : vector<2x32xf32>
    %cst_51 = arith.constant 5.000000e-01 : f32
    %125 = vector.broadcast %cst_51 : f32 to vector<2x32xf32>
    %126 = arith.mulf %125, %124 : vector<2x32xf32>
    %cst_52 = arith.constant 5.000000e-01 : f32
    %127 = vector.broadcast %cst_52 : f32 to vector<2x32xf32>
    %128 = arith.addf %126, %127 : vector<2x32xf32>
    %129 = arith.mulf %118, %88 : vector<2x32xf32>
    %130 = arith.mulf %110, %120 : vector<2x32xf32>
    %131 = arith.addf %129, %130 : vector<2x32xf32>
    %132 = math.tanh %131 : vector<2x32xf32>
    %133 = arith.mulf %128, %132 : vector<2x32xf32>
    %134 = arith.truncf %133 : vector<2x32xf32> to vector<2x32xbf16>
    %135 = arith.index_cast %c2_i32 : i32 to index
    %c0_53 = arith.constant 0 : index
    %c0_54 = arith.constant 0 : index
    %136 = vector.load %arg6[%135, %c0_53, %c0_54] : memref<4x2x32xbf16, #tpu.memory_space<vmem>>, vector<1x2x32xbf16>
    %137 = vector.shape_cast %136 : vector<1x2x32xbf16> to vector<2x32xbf16>
    %138 = vector.shape_cast %134 : vector<2x32xbf16> to vector<1x2x32xbf16>
    tpu.vector_store %arg6[%135, %c0_53, %c0_54], %138 {strides = array<i32>} : memref<4x2x32xbf16, #tpu.memory_space<vmem>>, vector<1x2x32xbf16>,
    %c3_i32 = arith.constant 3 : i32
    %139 = arith.index_cast %c3_i32 : i32 to index
    %c0_55 = arith.constant 0 : index
    %c0_56 = arith.constant 0 : index
    %140 = vector.load %arg2[%139, %c0_55, %c0_56] : memref<4x2x32xbf16, #tpu.memory_space<vmem>>, vector<1x2x32xbf16>
    %141 = vector.shape_cast %140 : vector<1x2x32xbf16> to vector<2x32xbf16>
    %cst_57 = arith.constant dense<0.000000e+00> : vector<2x128xf32>
    %142 = tpu.matmul %141, %3, %cst_57 {dimension_numbers = #tpu.dot_dimension_numbers<[1], [0], [0], [1], [0, 0, 1, 1], [], []>} : vector<2x32xbf16>, vector<32x128xbf16>, vector<2x128xf32> -> vector<2x128xf32>
    %cst_58 = arith.constant dense<0.000000e+00> : vector<2x128xf32>
    %143 = tpu.matmul %134, %4, %cst_58 {dimension_numbers = #tpu.dot_dimension_numbers<[1], [0], [0], [1], [0, 0, 1, 1], [], []>} : vector<2x32xbf16>, vector<32x128xbf16>, vector<2x128xf32> -> vector<2x128xf32>
    %144 = arith.addf %142, %143 : vector<2x128xf32>
    %145 = arith.addf %144, %7 : vector<2x128xf32>
    %146 = vector.extract_strided_slice %145 {offsets = [0, 0], sizes = [2, 32], strides = [1, 1]} : vector<2x128xf32> to vector<2x32xf32>
    %cst_59 = arith.constant 5.000000e-01 : f32
    %147 = vector.broadcast %cst_59 : f32 to vector<2x32xf32>
    %148 = arith.mulf %147, %146 : vector<2x32xf32>
    %149 = math.tanh %148 : vector<2x32xf32>
    %cst_60 = arith.constant 5.000000e-01 : f32
    %150 = vector.broadcast %cst_60 : f32 to vector<2x32xf32>
    %151 = arith.mulf %150, %149 : vector<2x32xf32>
    %cst_61 = arith.constant 5.000000e-01 : f32
    %152 = vector.broadcast %cst_61 : f32 to vector<2x32xf32>
    %153 = arith.addf %151, %152 : vector<2x32xf32>
    %154 = vector.extract_strided_slice %145 {offsets = [0, 32], sizes = [2, 32], strides = [1, 1]} : vector<2x128xf32> to vector<2x32xf32>
    %cst_62 = arith.constant 5.000000e-01 : f32
    %155 = vector.broadcast %cst_62 : f32 to vector<2x32xf32>
    %156 = arith.mulf %155, %154 : vector<2x32xf32>
    %157 = math.tanh %156 : vector<2x32xf32>
    %cst_63 = arith.constant 5.000000e-01 : f32
    %158 = vector.broadcast %cst_63 : f32 to vector<2x32xf32>
    %159 = arith.mulf %158, %157 : vector<2x32xf32>
    %cst_64 = arith.constant 5.000000e-01 : f32
    %160 = vector.broadcast %cst_64 : f32 to vector<2x32xf32>
    %161 = arith.addf %159, %160 : vector<2x32xf32>
    %162 = vector.extract_strided_slice %145 {offsets = [0, 64], sizes = [2, 32], strides = [1, 1]} : vector<2x128xf32> to vector<2x32xf32>
    %163 = math.tanh %162 : vector<2x32xf32>
    %164 = vector.extract_strided_slice %145 {offsets = [0, 96], sizes = [2, 32], strides = [1, 1]} : vector<2x128xf32> to vector<2x32xf32>
    %cst_65 = arith.constant 5.000000e-01 : f32
    %165 = vector.broadcast %cst_65 : f32 to vector<2x32xf32>
    %166 = arith.mulf %165, %164 : vector<2x32xf32>
    %167 = math.tanh %166 : vector<2x32xf32>
    %cst_66 = arith.constant 5.000000e-01 : f32
    %168 = vector.broadcast %cst_66 : f32 to vector<2x32xf32>
    %169 = arith.mulf %168, %167 : vector<2x32xf32>
    %cst_67 = arith.constant 5.000000e-01 : f32
    %170 = vector.broadcast %cst_67 : f32 to vector<2x32xf32>
    %171 = arith.addf %169, %170 : vector<2x32xf32>
    %172 = arith.mulf %161, %131 : vector<2x32xf32>
    %173 = arith.mulf %153, %163 : vector<2x32xf32>
    %174 = arith.addf %172, %173 : vector<2x32xf32>
    %175 = math.tanh %174 : vector<2x32xf32>
    %176 = arith.mulf %171, %175 : vector<2x32xf32>
    %177 = arith.truncf %176 : vector<2x32xf32> to vector<2x32xbf16>
    %178 = arith.index_cast %c3_i32 : i32 to index
    %c0_68 = arith.constant 0 : index
    %c0_69 = arith.constant 0 : index
    %179 = vector.load %arg6[%178, %c0_68, %c0_69] : memref<4x2x32xbf16, #tpu.memory_space<vmem>>, vector<1x2x32xbf16>
    %180 = vector.shape_cast %179 : vector<1x2x32xbf16> to vector<2x32xbf16>
    %181 = vector.shape_cast %177 : vector<2x32xbf16> to vector<1x2x32xbf16>
    tpu.vector_store %arg6[%178, %c0_68, %c0_69], %181 {strides = array<i32>} : memref<4x2x32xbf16, #tpu.memory_space<vmem>>, vector<1x2x32xbf16>,
    %c4_i32 = arith.constant 4 : i32
    %c0_70 = arith.constant 0 : index
    %c0_71 = arith.constant 0 : index
    %182 = vector.load %arg7[%c0_70, %c0_71] : memref<2x32xbf16, #tpu.memory_space<vmem>>, vector<2x32xbf16>
    tpu.vector_store %arg7[%c0_70, %c0_71], %177 {strides = array<i32>} : memref<2x32xbf16, #tpu.memory_space<vmem>>, vector<2x32xbf16>,
    %c0_72 = arith.constant 0 : index
    %c0_73 = arith.constant 0 : index
    %183 = vector.load %arg8[%c0_72, %c0_73] : memref<2x32xf32, #tpu.memory_space<vmem>>, vector<2x32xf32>
    tpu.vector_store %arg8[%c0_72, %c0_73], %174 {strides = array<i32>} : memref<2x32xf32, #tpu.memory_space<vmem>>, vector<2x32xf32>,
    return
  }
  func.func @transform_0(%arg0: i32, %arg1: i32) -> (i32, i32, i32) {
    %c0_i32 = arith.constant 0 : i32
    %c0_i32_0 = arith.constant 0 : i32
    return %arg1, %arg0, %c0_i32 : i32, i32, i32
  }
  func.func @transform_1(%arg0: i32, %arg1: i32) -> (i32, i32) {
    %c0_i32 = arith.constant 0 : i32
    %c0_i32_0 = arith.constant 0 : i32
    %c0_i32_1 = arith.constant 0 : i32
    return %c0_i32, %c0_i32_0 : i32, i32
  }
  func.func @transform_2(%arg0: i32, %arg1: i32) -> (i32, i32) {
    %c0_i32 = arith.constant 0 : i32
    %c0_i32_0 = arith.constant 0 : i32
    %c0_i32_1 = arith.constant 0 : i32
    return %c0_i32, %c0_i32_0 : i32, i32
  }
  func.func @transform_3(%arg0: i32, %arg1: i32) -> (i32, i32) {
    %c0_i32 = arith.constant 0 : i32
    %c0_i32_0 = arith.constant 0 : i32
    %c0_i32_1 = arith.constant 0 : i32
    return %c0_i32, %c0_i32_0 : i32, i32
  }
  func.func @transform_4(%arg0: i32, %arg1: i32) -> (i32, i32, i32) {
    %c0_i32 = arith.constant 0 : i32
    %c0_i32_0 = arith.constant 0 : i32
    return %arg1, %arg0, %c0_i32 : i32, i32, i32
  }
}

module attributes {stable_mosaic.version = 11 : i64} {
  func.func @_linear_kernel(%arg0: i32, %arg1: i32, %arg2: memref<16x32xbf16, #tpu.memory_space<vmem>>, %arg3: memref<32x3xbf16, #tpu.memory_space<vmem>>, %arg4: memref<1x3xf32, #tpu.memory_space<vmem>>, %arg5: memref<16x3xf32, #tpu.memory_space<vmem>>) attributes {dimension_semantics = [#tpu.dimension_semantics<parallel>, #tpu.dimension_semantics<parallel>], iteration_bounds = array<i64: 1, 1>, scalar_prefetch = 0 : i64, scratch_operands = 0 : i64, tpu.core_type = #tpu.core_type<tc>, window_params = [{transform_indices = @transform_0, window_bounds = array<i64: 16, 32>}, {transform_indices = @transform_1, window_bounds = array<i64: 32, 3>}, {transform_indices = @transform_2, window_bounds = array<i64: 1, 3>}, {transform_indices = @transform_3, window_bounds = array<i64: 16, 3>}]} {
    %c0 = arith.constant 0 : index
    %c0_0 = arith.constant 0 : index
    %0 = vector.load %arg2[%c0, %c0_0] : memref<16x32xbf16, #tpu.memory_space<vmem>>, vector<16x32xbf16>
    %c0_1 = arith.constant 0 : index
    %c0_2 = arith.constant 0 : index
    %1 = vector.load %arg3[%c0_1, %c0_2] : memref<32x3xbf16, #tpu.memory_space<vmem>>, vector<32x3xbf16>
    %cst = arith.constant dense<0.000000e+00> : vector<16x3xf32>
    %2 = tpu.matmul %0, %1, %cst {dimension_numbers = #tpu.dot_dimension_numbers<[1], [0], [0], [1], [0, 0, 1, 1], [], []>} : vector<16x32xbf16>, vector<32x3xbf16>, vector<16x3xf32> -> vector<16x3xf32>
    %c0_3 = arith.constant 0 : index
    %c0_4 = arith.constant 0 : index
    %3 = vector.load %arg4[%c0_3, %c0_4] : memref<1x3xf32, #tpu.memory_space<vmem>>, vector<1x3xf32>
    %4 = vector.broadcast %3 : vector<1x3xf32> to vector<16x3xf32>
    %5 = arith.addf %2, %4 : vector<16x3xf32>
    %6 = math.tanh %5 : vector<16x3xf32>
    %c0_5 = arith.constant 0 : index
    %c0_6 = arith.constant 0 : index
    %7 = vector.load %arg5[%c0_5, %c0_6] : memref<16x3xf32, #tpu.memory_space<vmem>>, vector<16x3xf32>
    tpu.vector_store %arg5[%c0_5, %c0_6], %6 {strides = array<i32>} : memref<16x3xf32, #tpu.memory_space<vmem>>, vector<16x3xf32>,
    return
  }
  func.func @transform_0(%arg0: i32, %arg1: i32) -> (i32, i32) {
    %c0_i32 = arith.constant 0 : i32
    %c0_i32_0 = arith.constant 0 : i32
    return %arg1, %c0_i32 : i32, i32
  }
  func.func @transform_1(%arg0: i32, %arg1: i32) -> (i32, i32) {
    %c0_i32 = arith.constant 0 : i32
    %c0_i32_0 = arith.constant 0 : i32
    return %c0_i32, %arg0 : i32, i32
  }
  func.func @transform_2(%arg0: i32, %arg1: i32) -> (i32, i32) {
    %c0_i32 = arith.constant 0 : i32
    %c0_i32_0 = arith.constant 0 : i32
    return %c0_i32, %arg0 : i32, i32
  }
  func.func @transform_3(%arg0: i32, %arg1: i32) -> (i32, i32) {
    %c0_i32 = arith.constant 0 : i32
    return %arg1, %arg0 : i32, i32
  }
}

module attributes {stable_mosaic.version = 11 : i64} {
  func.func @_lstm_layer_kernel(%arg0: i32, %arg1: i32, %arg2: memref<4x2x4xf32, #tpu.memory_space<vmem>>, %arg3: memref<4x128xbf16, #tpu.memory_space<vmem>>, %arg4: memref<32x128xbf16, #tpu.memory_space<vmem>>, %arg5: memref<1x128xf32, #tpu.memory_space<vmem>>, %arg6: memref<4x2x32xbf16, #tpu.memory_space<vmem>>, %arg7: memref<2x32xbf16, #tpu.memory_space<vmem>>, %arg8: memref<2x32xf32, #tpu.memory_space<vmem>>) attributes {dimension_semantics = [#tpu.dimension_semantics<parallel>, #tpu.dimension_semantics<arbitrary>], iteration_bounds = array<i64: 1, 2>, scalar_prefetch = 0 : i64, scratch_operands = 2 : i64, tpu.core_type = #tpu.core_type<tc>, window_params = [{transform_indices = @transform_0, window_bounds = array<i64: 4, 2, 4>}, {pipeline_mode = #tpu.pipeline_mode<synchronous>, transform_indices = @transform_1, window_bounds = array<i64: 4, 128>}, {pipeline_mode = #tpu.pipeline_mode<synchronous>, transform_indices = @transform_2, window_bounds = array<i64: 32, 128>}, {pipeline_mode = #tpu.pipeline_mode<synchronous>, transform_indices = @transform_3, window_bounds = array<i64: 1, 128>}, {transform_indices = @transform_4, window_bounds = array<i64: 4, 2, 32>}]} {
    %c0_i32 = arith.constant 0 : i32
    %0 = arith.cmpi eq, %arg1, %c0_i32 : i32
    %1 = arith.extui %0 : i1 to i32
    %c0_i32_0 = arith.constant 0 : i32
    %2 = arith.cmpi ne, %1, %c0_i32_0 : i32
    scf.if %2 {
      %cst_74 = arith.constant 0.000000e+00 : bf16
      %188 = vector.broadcast %cst_74 : bf16 to vector<2x32xbf16>
      %c0_75 = arith.constant 0 : index
      %c0_76 = arith.constant 0 : index
      %189 = vector.load %arg7[%c0_75, %c0_76] : memref<2x32xbf16, #tpu.memory_space<vmem>>, vector<2x32xbf16>
      tpu.vector_store %arg7[%c0_75, %c0_76], %188 {strides = array<i32>} : memref<2x32xbf16, #tpu.memory_space<vmem>>, vector<2x32xbf16>,
      %cst_77 = arith.constant 0.000000e+00 : f32
      %190 = vector.broadcast %cst_77 : f32 to vector<2x32xf32>
      %c0_78 = arith.constant 0 : index
      %c0_79 = arith.constant 0 : index
      %191 = vector.load %arg8[%c0_78, %c0_79] : memref<2x32xf32, #tpu.memory_space<vmem>>, vector<2x32xf32>
      tpu.vector_store %arg8[%c0_78, %c0_79], %190 {strides = array<i32>} : memref<2x32xf32, #tpu.memory_space<vmem>>, vector<2x32xf32>,
    } else {
    }
    %c0 = arith.constant 0 : index
    %c0_1 = arith.constant 0 : index
    %3 = vector.load %arg3[%c0, %c0_1] : memref<4x128xbf16, #tpu.memory_space<vmem>>, vector<4x128xbf16>
    %c0_2 = arith.constant 0 : index
    %c0_3 = arith.constant 0 : index
    %4 = vector.load %arg4[%c0_2, %c0_3] : memref<32x128xbf16, #tpu.memory_space<vmem>>, vector<32x128xbf16>
    %c0_4 = arith.constant 0 : index
    %c0_5 = arith.constant 0 : index
    %5 = vector.load %arg5[%c0_4, %c0_5] : memref<1x128xf32, #tpu.memory_space<vmem>>, vector<1x128xf32>
    %6 = vector.shape_cast %5 : vector<1x128xf32> to vector<1x128xf32>
    %7 = vector.broadcast %6 : vector<1x128xf32> to vector<2x128xf32>
    %c0_6 = arith.constant 0 : index
    %c0_7 = arith.constant 0 : index
    %8 = vector.load %arg7[%c0_6, %c0_7] : memref<2x32xbf16, #tpu.memory_space<vmem>>, vector<2x32xbf16>
    %c0_8 = arith.constant 0 : index
    %c0_9 = arith.constant 0 : index
    %9 = vector.load %arg8[%c0_8, %c0_9] : memref<2x32xf32, #tpu.memory_space<vmem>>, vector<2x32xf32>
    %c0_i32_10 = arith.constant 0 : i32
    %10 = arith.index_cast %c0_i32_10 : i32 to index
    %c0_11 = arith.constant 0 : index
    %c0_12 = arith.constant 0 : index
    %11 = vector.load %arg2[%10, %c0_11, %c0_12] : memref<4x2x4xf32, #tpu.memory_space<vmem>>, vector<1x2x4xf32>
    %12 = vector.shape_cast %11 : vector<1x2x4xf32> to vector<2x4xf32>
    %13 = arith.truncf %12 : vector<2x4xf32> to vector<2x4xbf16>
    %cst = arith.constant dense<0.000000e+00> : vector<2x128xf32>
    %14 = tpu.matmul %13, %3, %cst {dimension_numbers = #tpu.dot_dimension_numbers<[1], [0], [0], [1], [0, 0, 1, 1], [], []>} : vector<2x4xbf16>, vector<4x128xbf16>, vector<2x128xf32> -> vector<2x128xf32>
    %cst_13 = arith.constant dense<0.000000e+00> : vector<2x128xf32>
    %15 = tpu.matmul %8, %4, %cst_13 {dimension_numbers = #tpu.dot_dimension_numbers<[1], [0], [0], [1], [0, 0, 1, 1], [], []>} : vector<2x32xbf16>, vector<32x128xbf16>, vector<2x128xf32> -> vector<2x128xf32>
    %16 = arith.addf %14, %15 : vector<2x128xf32>
    %17 = arith.addf %16, %7 : vector<2x128xf32>
    %18 = vector.extract_strided_slice %17 {offsets = [0, 0], sizes = [2, 32], strides = [1, 1]} : vector<2x128xf32> to vector<2x32xf32>
    %cst_14 = arith.constant 5.000000e-01 : f32
    %19 = vector.broadcast %cst_14 : f32 to vector<2x32xf32>
    %20 = arith.mulf %19, %18 : vector<2x32xf32>
    %21 = math.tanh %20 : vector<2x32xf32>
    %cst_15 = arith.constant 5.000000e-01 : f32
    %22 = vector.broadcast %cst_15 : f32 to vector<2x32xf32>
    %23 = arith.mulf %22, %21 : vector<2x32xf32>
    %cst_16 = arith.constant 5.000000e-01 : f32
    %24 = vector.broadcast %cst_16 : f32 to vector<2x32xf32>
    %25 = arith.addf %23, %24 : vector<2x32xf32>
    %26 = vector.extract_strided_slice %17 {offsets = [0, 32], sizes = [2, 32], strides = [1, 1]} : vector<2x128xf32> to vector<2x32xf32>
    %cst_17 = arith.constant 5.000000e-01 : f32
    %27 = vector.broadcast %cst_17 : f32 to vector<2x32xf32>
    %28 = arith.mulf %27, %26 : vector<2x32xf32>
    %29 = math.tanh %28 : vector<2x32xf32>
    %cst_18 = arith.constant 5.000000e-01 : f32
    %30 = vector.broadcast %cst_18 : f32 to vector<2x32xf32>
    %31 = arith.mulf %30, %29 : vector<2x32xf32>
    %cst_19 = arith.constant 5.000000e-01 : f32
    %32 = vector.broadcast %cst_19 : f32 to vector<2x32xf32>
    %33 = arith.addf %31, %32 : vector<2x32xf32>
    %34 = vector.extract_strided_slice %17 {offsets = [0, 64], sizes = [2, 32], strides = [1, 1]} : vector<2x128xf32> to vector<2x32xf32>
    %35 = math.tanh %34 : vector<2x32xf32>
    %36 = vector.extract_strided_slice %17 {offsets = [0, 96], sizes = [2, 32], strides = [1, 1]} : vector<2x128xf32> to vector<2x32xf32>
    %cst_20 = arith.constant 5.000000e-01 : f32
    %37 = vector.broadcast %cst_20 : f32 to vector<2x32xf32>
    %38 = arith.mulf %37, %36 : vector<2x32xf32>
    %39 = math.tanh %38 : vector<2x32xf32>
    %cst_21 = arith.constant 5.000000e-01 : f32
    %40 = vector.broadcast %cst_21 : f32 to vector<2x32xf32>
    %41 = arith.mulf %40, %39 : vector<2x32xf32>
    %cst_22 = arith.constant 5.000000e-01 : f32
    %42 = vector.broadcast %cst_22 : f32 to vector<2x32xf32>
    %43 = arith.addf %41, %42 : vector<2x32xf32>
    %44 = arith.mulf %33, %9 : vector<2x32xf32>
    %45 = arith.mulf %25, %35 : vector<2x32xf32>
    %46 = arith.addf %44, %45 : vector<2x32xf32>
    %47 = math.tanh %46 : vector<2x32xf32>
    %48 = arith.mulf %43, %47 : vector<2x32xf32>
    %49 = arith.truncf %48 : vector<2x32xf32> to vector<2x32xbf16>
    %50 = arith.index_cast %c0_i32_10 : i32 to index
    %c0_23 = arith.constant 0 : index
    %c0_24 = arith.constant 0 : index
    %51 = vector.load %arg6[%50, %c0_23, %c0_24] : memref<4x2x32xbf16, #tpu.memory_space<vmem>>, vector<1x2x32xbf16>
    %52 = vector.shape_cast %51 : vector<1x2x32xbf16> to vector<2x32xbf16>
    %53 = vector.shape_cast %49 : vector<2x32xbf16> to vector<1x2x32xbf16>
    tpu.vector_store %arg6[%50, %c0_23, %c0_24], %53 {strides = array<i32>} : memref<4x2x32xbf16, #tpu.memory_space<vmem>>, vector<1x2x32xbf16>,
    %c1_i32 = arith.constant 1 : i32
    %54 = arith.index_cast %c1_i32 : i32 to index
    %c0_25 = arith.constant 0 : index
    %c0_26 = arith.constant 0 : index
    %55 = vector.load %arg2[%54, %c0_25, %c0_26] : memref<4x2x4xf32, #tpu.memory_space<vmem>>, vector<1x2x4xf32>
    %56 = vector.shape_cast %55 : vector<1x2x4xf32> to vector<2x4xf32>
    %57 = arith.truncf %56 : vector<2x4xf32> to vector<2x4xbf16>
    %cst_27 = arith.constant dense<0.000000e+00> : vector<2x128xf32>
    %58 = tpu.matmul %57, %3, %cst_27 {dimension_numbers = #tpu.dot_dimension_numbers<[1], [0], [0], [1], [0, 0, 1, 1], [], []>} : vector<2x4xbf16>, vector<4x128xbf16>, vector<2x128xf32> -> vector<2x128xf32>
    %cst_28 = arith.constant dense<0.000000e+00> : vector<2x128xf32>
    %59 = tpu.matmul %49, %4, %cst_28 {dimension_numbers = #tpu.dot_dimension_numbers<[1], [0], [0], [1], [0, 0, 1, 1], [], []>} : vector<2x32xbf16>, vector<32x128xbf16>, vector<2x128xf32> -> vector<2x128xf32>
    %60 = arith.addf %58, %59 : vector<2x128xf32>
    %61 = arith.addf %60, %7 : vector<2x128xf32>
    %62 = vector.extract_strided_slice %61 {offsets = [0, 0], sizes = [2, 32], strides = [1, 1]} : vector<2x128xf32> to vector<2x32xf32>
    %cst_29 = arith.constant 5.000000e-01 : f32
    %63 = vector.broadcast %cst_29 : f32 to vector<2x32xf32>
    %64 = arith.mulf %63, %62 : vector<2x32xf32>
    %65 = math.tanh %64 : vector<2x32xf32>
    %cst_30 = arith.constant 5.000000e-01 : f32
    %66 = vector.broadcast %cst_30 : f32 to vector<2x32xf32>
    %67 = arith.mulf %66, %65 : vector<2x32xf32>
    %cst_31 = arith.constant 5.000000e-01 : f32
    %68 = vector.broadcast %cst_31 : f32 to vector<2x32xf32>
    %69 = arith.addf %67, %68 : vector<2x32xf32>
    %70 = vector.extract_strided_slice %61 {offsets = [0, 32], sizes = [2, 32], strides = [1, 1]} : vector<2x128xf32> to vector<2x32xf32>
    %cst_32 = arith.constant 5.000000e-01 : f32
    %71 = vector.broadcast %cst_32 : f32 to vector<2x32xf32>
    %72 = arith.mulf %71, %70 : vector<2x32xf32>
    %73 = math.tanh %72 : vector<2x32xf32>
    %cst_33 = arith.constant 5.000000e-01 : f32
    %74 = vector.broadcast %cst_33 : f32 to vector<2x32xf32>
    %75 = arith.mulf %74, %73 : vector<2x32xf32>
    %cst_34 = arith.constant 5.000000e-01 : f32
    %76 = vector.broadcast %cst_34 : f32 to vector<2x32xf32>
    %77 = arith.addf %75, %76 : vector<2x32xf32>
    %78 = vector.extract_strided_slice %61 {offsets = [0, 64], sizes = [2, 32], strides = [1, 1]} : vector<2x128xf32> to vector<2x32xf32>
    %79 = math.tanh %78 : vector<2x32xf32>
    %80 = vector.extract_strided_slice %61 {offsets = [0, 96], sizes = [2, 32], strides = [1, 1]} : vector<2x128xf32> to vector<2x32xf32>
    %cst_35 = arith.constant 5.000000e-01 : f32
    %81 = vector.broadcast %cst_35 : f32 to vector<2x32xf32>
    %82 = arith.mulf %81, %80 : vector<2x32xf32>
    %83 = math.tanh %82 : vector<2x32xf32>
    %cst_36 = arith.constant 5.000000e-01 : f32
    %84 = vector.broadcast %cst_36 : f32 to vector<2x32xf32>
    %85 = arith.mulf %84, %83 : vector<2x32xf32>
    %cst_37 = arith.constant 5.000000e-01 : f32
    %86 = vector.broadcast %cst_37 : f32 to vector<2x32xf32>
    %87 = arith.addf %85, %86 : vector<2x32xf32>
    %88 = arith.mulf %77, %46 : vector<2x32xf32>
    %89 = arith.mulf %69, %79 : vector<2x32xf32>
    %90 = arith.addf %88, %89 : vector<2x32xf32>
    %91 = math.tanh %90 : vector<2x32xf32>
    %92 = arith.mulf %87, %91 : vector<2x32xf32>
    %93 = arith.truncf %92 : vector<2x32xf32> to vector<2x32xbf16>
    %94 = arith.index_cast %c1_i32 : i32 to index
    %c0_38 = arith.constant 0 : index
    %c0_39 = arith.constant 0 : index
    %95 = vector.load %arg6[%94, %c0_38, %c0_39] : memref<4x2x32xbf16, #tpu.memory_space<vmem>>, vector<1x2x32xbf16>
    %96 = vector.shape_cast %95 : vector<1x2x32xbf16> to vector<2x32xbf16>
    %97 = vector.shape_cast %93 : vector<2x32xbf16> to vector<1x2x32xbf16>
    tpu.vector_store %arg6[%94, %c0_38, %c0_39], %97 {strides = array<i32>} : memref<4x2x32xbf16, #tpu.memory_space<vmem>>, vector<1x2x32xbf16>,
    %c2_i32 = arith.constant 2 : i32
    %98 = arith.index_cast %c2_i32 : i32 to index
    %c0_40 = arith.constant 0 : index
    %c0_41 = arith.constant 0 : index
    %99 = vector.load %arg2[%98, %c0_40, %c0_41] : memref<4x2x4xf32, #tpu.memory_space<vmem>>, vector<1x2x4xf32>
    %100 = vector.shape_cast %99 : vector<1x2x4xf32> to vector<2x4xf32>
    %101 = arith.truncf %100 : vector<2x4xf32> to vector<2x4xbf16>
    %cst_42 = arith.constant dense<0.000000e+00> : vector<2x128xf32>
    %102 = tpu.matmul %101, %3, %cst_42 {dimension_numbers = #tpu.dot_dimension_numbers<[1], [0], [0], [1], [0, 0, 1, 1], [], []>} : vector<2x4xbf16>, vector<4x128xbf16>, vector<2x128xf32> -> vector<2x128xf32>
    %cst_43 = arith.constant dense<0.000000e+00> : vector<2x128xf32>
    %103 = tpu.matmul %93, %4, %cst_43 {dimension_numbers = #tpu.dot_dimension_numbers<[1], [0], [0], [1], [0, 0, 1, 1], [], []>} : vector<2x32xbf16>, vector<32x128xbf16>, vector<2x128xf32> -> vector<2x128xf32>
    %104 = arith.addf %102, %103 : vector<2x128xf32>
    %105 = arith.addf %104, %7 : vector<2x128xf32>
    %106 = vector.extract_strided_slice %105 {offsets = [0, 0], sizes = [2, 32], strides = [1, 1]} : vector<2x128xf32> to vector<2x32xf32>
    %cst_44 = arith.constant 5.000000e-01 : f32
    %107 = vector.broadcast %cst_44 : f32 to vector<2x32xf32>
    %108 = arith.mulf %107, %106 : vector<2x32xf32>
    %109 = math.tanh %108 : vector<2x32xf32>
    %cst_45 = arith.constant 5.000000e-01 : f32
    %110 = vector.broadcast %cst_45 : f32 to vector<2x32xf32>
    %111 = arith.mulf %110, %109 : vector<2x32xf32>
    %cst_46 = arith.constant 5.000000e-01 : f32
    %112 = vector.broadcast %cst_46 : f32 to vector<2x32xf32>
    %113 = arith.addf %111, %112 : vector<2x32xf32>
    %114 = vector.extract_strided_slice %105 {offsets = [0, 32], sizes = [2, 32], strides = [1, 1]} : vector<2x128xf32> to vector<2x32xf32>
    %cst_47 = arith.constant 5.000000e-01 : f32
    %115 = vector.broadcast %cst_47 : f32 to vector<2x32xf32>
    %116 = arith.mulf %115, %114 : vector<2x32xf32>
    %117 = math.tanh %116 : vector<2x32xf32>
    %cst_48 = arith.constant 5.000000e-01 : f32
    %118 = vector.broadcast %cst_48 : f32 to vector<2x32xf32>
    %119 = arith.mulf %118, %117 : vector<2x32xf32>
    %cst_49 = arith.constant 5.000000e-01 : f32
    %120 = vector.broadcast %cst_49 : f32 to vector<2x32xf32>
    %121 = arith.addf %119, %120 : vector<2x32xf32>
    %122 = vector.extract_strided_slice %105 {offsets = [0, 64], sizes = [2, 32], strides = [1, 1]} : vector<2x128xf32> to vector<2x32xf32>
    %123 = math.tanh %122 : vector<2x32xf32>
    %124 = vector.extract_strided_slice %105 {offsets = [0, 96], sizes = [2, 32], strides = [1, 1]} : vector<2x128xf32> to vector<2x32xf32>
    %cst_50 = arith.constant 5.000000e-01 : f32
    %125 = vector.broadcast %cst_50 : f32 to vector<2x32xf32>
    %126 = arith.mulf %125, %124 : vector<2x32xf32>
    %127 = math.tanh %126 : vector<2x32xf32>
    %cst_51 = arith.constant 5.000000e-01 : f32
    %128 = vector.broadcast %cst_51 : f32 to vector<2x32xf32>
    %129 = arith.mulf %128, %127 : vector<2x32xf32>
    %cst_52 = arith.constant 5.000000e-01 : f32
    %130 = vector.broadcast %cst_52 : f32 to vector<2x32xf32>
    %131 = arith.addf %129, %130 : vector<2x32xf32>
    %132 = arith.mulf %121, %90 : vector<2x32xf32>
    %133 = arith.mulf %113, %123 : vector<2x32xf32>
    %134 = arith.addf %132, %133 : vector<2x32xf32>
    %135 = math.tanh %134 : vector<2x32xf32>
    %136 = arith.mulf %131, %135 : vector<2x32xf32>
    %137 = arith.truncf %136 : vector<2x32xf32> to vector<2x32xbf16>
    %138 = arith.index_cast %c2_i32 : i32 to index
    %c0_53 = arith.constant 0 : index
    %c0_54 = arith.constant 0 : index
    %139 = vector.load %arg6[%138, %c0_53, %c0_54] : memref<4x2x32xbf16, #tpu.memory_space<vmem>>, vector<1x2x32xbf16>
    %140 = vector.shape_cast %139 : vector<1x2x32xbf16> to vector<2x32xbf16>
    %141 = vector.shape_cast %137 : vector<2x32xbf16> to vector<1x2x32xbf16>
    tpu.vector_store %arg6[%138, %c0_53, %c0_54], %141 {strides = array<i32>} : memref<4x2x32xbf16, #tpu.memory_space<vmem>>, vector<1x2x32xbf16>,
    %c3_i32 = arith.constant 3 : i32
    %142 = arith.index_cast %c3_i32 : i32 to index
    %c0_55 = arith.constant 0 : index
    %c0_56 = arith.constant 0 : index
    %143 = vector.load %arg2[%142, %c0_55, %c0_56] : memref<4x2x4xf32, #tpu.memory_space<vmem>>, vector<1x2x4xf32>
    %144 = vector.shape_cast %143 : vector<1x2x4xf32> to vector<2x4xf32>
    %145 = arith.truncf %144 : vector<2x4xf32> to vector<2x4xbf16>
    %cst_57 = arith.constant dense<0.000000e+00> : vector<2x128xf32>
    %146 = tpu.matmul %145, %3, %cst_57 {dimension_numbers = #tpu.dot_dimension_numbers<[1], [0], [0], [1], [0, 0, 1, 1], [], []>} : vector<2x4xbf16>, vector<4x128xbf16>, vector<2x128xf32> -> vector<2x128xf32>
    %cst_58 = arith.constant dense<0.000000e+00> : vector<2x128xf32>
    %147 = tpu.matmul %137, %4, %cst_58 {dimension_numbers = #tpu.dot_dimension_numbers<[1], [0], [0], [1], [0, 0, 1, 1], [], []>} : vector<2x32xbf16>, vector<32x128xbf16>, vector<2x128xf32> -> vector<2x128xf32>
    %148 = arith.addf %146, %147 : vector<2x128xf32>
    %149 = arith.addf %148, %7 : vector<2x128xf32>
    %150 = vector.extract_strided_slice %149 {offsets = [0, 0], sizes = [2, 32], strides = [1, 1]} : vector<2x128xf32> to vector<2x32xf32>
    %cst_59 = arith.constant 5.000000e-01 : f32
    %151 = vector.broadcast %cst_59 : f32 to vector<2x32xf32>
    %152 = arith.mulf %151, %150 : vector<2x32xf32>
    %153 = math.tanh %152 : vector<2x32xf32>
    %cst_60 = arith.constant 5.000000e-01 : f32
    %154 = vector.broadcast %cst_60 : f32 to vector<2x32xf32>
    %155 = arith.mulf %154, %153 : vector<2x32xf32>
    %cst_61 = arith.constant 5.000000e-01 : f32
    %156 = vector.broadcast %cst_61 : f32 to vector<2x32xf32>
    %157 = arith.addf %155, %156 : vector<2x32xf32>
    %158 = vector.extract_strided_slice %149 {offsets = [0, 32], sizes = [2, 32], strides = [1, 1]} : vector<2x128xf32> to vector<2x32xf32>
    %cst_62 = arith.constant 5.000000e-01 : f32
    %159 = vector.broadcast %cst_62 : f32 to vector<2x32xf32>
    %160 = arith.mulf %159, %158 : vector<2x32xf32>
    %161 = math.tanh %160 : vector<2x32xf32>
    %cst_63 = arith.constant 5.000000e-01 : f32
    %162 = vector.broadcast %cst_63 : f32 to vector<2x32xf32>
    %163 = arith.mulf %162, %161 : vector<2x32xf32>
    %cst_64 = arith.constant 5.000000e-01 : f32
    %164 = vector.broadcast %cst_64 : f32 to vector<2x32xf32>
    %165 = arith.addf %163, %164 : vector<2x32xf32>
    %166 = vector.extract_strided_slice %149 {offsets = [0, 64], sizes = [2, 32], strides = [1, 1]} : vector<2x128xf32> to vector<2x32xf32>
    %167 = math.tanh %166 : vector<2x32xf32>
    %168 = vector.extract_strided_slice %149 {offsets = [0, 96], sizes = [2, 32], strides = [1, 1]} : vector<2x128xf32> to vector<2x32xf32>
    %cst_65 = arith.constant 5.000000e-01 : f32
    %169 = vector.broadcast %cst_65 : f32 to vector<2x32xf32>
    %170 = arith.mulf %169, %168 : vector<2x32xf32>
    %171 = math.tanh %170 : vector<2x32xf32>
    %cst_66 = arith.constant 5.000000e-01 : f32
    %172 = vector.broadcast %cst_66 : f32 to vector<2x32xf32>
    %173 = arith.mulf %172, %171 : vector<2x32xf32>
    %cst_67 = arith.constant 5.000000e-01 : f32
    %174 = vector.broadcast %cst_67 : f32 to vector<2x32xf32>
    %175 = arith.addf %173, %174 : vector<2x32xf32>
    %176 = arith.mulf %165, %134 : vector<2x32xf32>
    %177 = arith.mulf %157, %167 : vector<2x32xf32>
    %178 = arith.addf %176, %177 : vector<2x32xf32>
    %179 = math.tanh %178 : vector<2x32xf32>
    %180 = arith.mulf %175, %179 : vector<2x32xf32>
    %181 = arith.truncf %180 : vector<2x32xf32> to vector<2x32xbf16>
    %182 = arith.index_cast %c3_i32 : i32 to index
    %c0_68 = arith.constant 0 : index
    %c0_69 = arith.constant 0 : index
    %183 = vector.load %arg6[%182, %c0_68, %c0_69] : memref<4x2x32xbf16, #tpu.memory_space<vmem>>, vector<1x2x32xbf16>
    %184 = vector.shape_cast %183 : vector<1x2x32xbf16> to vector<2x32xbf16>
    %185 = vector.shape_cast %181 : vector<2x32xbf16> to vector<1x2x32xbf16>
    tpu.vector_store %arg6[%182, %c0_68, %c0_69], %185 {strides = array<i32>} : memref<4x2x32xbf16, #tpu.memory_space<vmem>>, vector<1x2x32xbf16>,
    %c4_i32 = arith.constant 4 : i32
    %c0_70 = arith.constant 0 : index
    %c0_71 = arith.constant 0 : index
    %186 = vector.load %arg7[%c0_70, %c0_71] : memref<2x32xbf16, #tpu.memory_space<vmem>>, vector<2x32xbf16>
    tpu.vector_store %arg7[%c0_70, %c0_71], %181 {strides = array<i32>} : memref<2x32xbf16, #tpu.memory_space<vmem>>, vector<2x32xbf16>,
    %c0_72 = arith.constant 0 : index
    %c0_73 = arith.constant 0 : index
    %187 = vector.load %arg8[%c0_72, %c0_73] : memref<2x32xf32, #tpu.memory_space<vmem>>, vector<2x32xf32>
    tpu.vector_store %arg8[%c0_72, %c0_73], %178 {strides = array<i32>} : memref<2x32xf32, #tpu.memory_space<vmem>>, vector<2x32xf32>,
    return
  }
  func.func @transform_0(%arg0: i32, %arg1: i32) -> (i32, i32, i32) {
    %c0_i32 = arith.constant 0 : i32
    %c0_i32_0 = arith.constant 0 : i32
    return %arg1, %arg0, %c0_i32 : i32, i32, i32
  }
  func.func @transform_1(%arg0: i32, %arg1: i32) -> (i32, i32) {
    %c0_i32 = arith.constant 0 : i32
    %c0_i32_0 = arith.constant 0 : i32
    %c0_i32_1 = arith.constant 0 : i32
    return %c0_i32, %c0_i32_0 : i32, i32
  }
  func.func @transform_2(%arg0: i32, %arg1: i32) -> (i32, i32) {
    %c0_i32 = arith.constant 0 : i32
    %c0_i32_0 = arith.constant 0 : i32
    %c0_i32_1 = arith.constant 0 : i32
    return %c0_i32, %c0_i32_0 : i32, i32
  }
  func.func @transform_3(%arg0: i32, %arg1: i32) -> (i32, i32) {
    %c0_i32 = arith.constant 0 : i32
    %c0_i32_0 = arith.constant 0 : i32
    %c0_i32_1 = arith.constant 0 : i32
    return %c0_i32, %c0_i32_0 : i32, i32
  }
  func.func @transform_4(%arg0: i32, %arg1: i32) -> (i32, i32, i32) {
    %c0_i32 = arith.constant 0 : i32
    %c0_i32_0 = arith.constant 0 : i32
    return %arg1, %arg0, %c0_i32 : i32, i32, i32
  }
}

</mosaic_0001>

<llo_original>
// kernel: tpu_custom_call.1
$region0: #{tpu_custom_call.1}
  #allocation0 [shape = 'u32[]', space=smem, size = 0x4, offset = 0x4, fixed_abs, tag = 'smem constant byte address 0x4 - core index']
  #allocation1 [shape = 'u32[144,128]{1,0:T(1,128)}', space=vmem, size = 0x12000, scoped, tag = 'internal scratch']
  %s0 = inlined_call_operand.hbm [shape: f32[8,128], index: 0, kind: input, shape index: {}]
  %s1 = inlined_call_operand.hbm [shape: f32[8,128], index: 1, kind: output, shape index: {}]
  %s2 = sld [smem:[#allocation0]]
  $region18: #{tpu_custom_call.1} parent=0
    _
  %s4 = ssub.s32 1, %s2
  %s5 = scalar_select 0, %s4, %s2
  $region1: #{tpu_custom_call.1} parent=0
    #allocation2 [shape = 'u8[4096]{0}', space=vmem, size = 0x1000, scoped, tag = 'input window, operand 0, single buffered']
    #allocation3 [shape = 's32[1]{0}', space=sflag, size = 0x4, scoped, tag = 'scoped memory for tpu_custom_call.1']
    #allocation4 [shape = 's32[1]{0}', space=sflag, size = 0x4, scoped, tag = 'scoped memory for tpu_custom_call.1']
    #allocation5 [shape = 'u8[4096]{0}', space=vmem, size = 0x1000, scoped, tag = 'output window, operand 0, single buffered']
    %6 = vsyncpa [#allocation3], 0
    %7 = vsyncpa [#allocation4], 0
    // Predicated region
    $region2: #{tpu_custom_call.1} parent=1 // pred_check
      _
    $region3: #{tpu_custom_call.1} parent=1 // pred_check_branch
      %9 = sbr.rel (0) target = $region5
    $region4: #{tpu_custom_call.1} parent=1 // pred_region
      %s11 = ssub.s32 128, 128
      %12 = vsyncadd [#allocation3], %s11
      %s14 = sshll.u32 [#allocation2], 4
      %s15 = int_to_ptr.vmem [resolvable:$true] %s14
      %17 = dma.hbm_to_vmem [thread:$0]  %s0, 128, %s15, [#allocation3]
    $region5: #{tpu_custom_call.1} parent=1 // pred_fallthru
      _
    // Predicated region
    $region6: #{tpu_custom_call.1} parent=1 // pred_check
      _
    $region7: #{tpu_custom_call.1} parent=1 // pred_check_branch
      %19 = sbr.rel (0) target = $region9
    $region8: #{tpu_custom_call.1} parent=1 // pred_region
      %20 = dma.done [#allocation3], 128
    $region9: #{tpu_custom_call.1} parent=1 // pred_fallthru
      _
    %v21 = vld [vmem:[#allocation2] sm:$0xff]
    %v22 = vmul.f32 %v21, 2.0
    %23 = vst [vmem:[#allocation5] sm:$0xff] %v22
    // Predicated region
    $region10: #{tpu_custom_call.1} parent=1 // pred_check
      _
    $region11: #{tpu_custom_call.1} parent=1 // pred_check_branch
      %25 = sbr.rel (0) target = $region13
    $region12: #{tpu_custom_call.1} parent=1 // pred_region
      %s27 = ssub.s32 128, 128
      %28 = vsyncadd [#allocation4], %s27
      %s30 = sshll.u32 [#allocation5], 4
      %s31 = int_to_ptr.vmem [resolvable:$true] %s30
      %33 = dma.vmem_to_hbm [thread:$0]  %s31, 128, %s1, [#allocation4]
    $region13: #{tpu_custom_call.1} parent=1 // pred_fallthru
      _
    // Predicated region
    $region14: #{tpu_custom_call.1} parent=1 // pred_check
      _
    $region15: #{tpu_custom_call.1} parent=1 // pred_check_branch
      %35 = sbr.rel (0) target = $region17
    $region16: #{tpu_custom_call.1} parent=1 // pred_region
      %36 = dma.done [#allocation4], 128
    $region17: #{tpu_custom_call.1} parent=1 // pred_fallthru
      _
    %37 = vsyncpa [#allocation3], 1
    %38 = vsyncpa [#allocation4], 1

// kernel: lstm_forward.4
$region0: #{lstm_forward.4}
  #allocation0 [shape = 'u32[]', space=smem, size = 0x4, offset = 0x4, fixed_abs, tag = 'smem constant byte address 0x4 - core index']
  #allocation1 [shape = 'u32[144,128]{1,0:T(1,128)}', space=vmem, size = 0x12000, scoped, tag = 'internal scratch']
  #allocation2 [shape = 'bf16[2,32]{1,0:T(2,128)(2,1)}', space=vmem, size = 0x200, scoped, tag = 'scratch operand']
  #allocation3 [shape = 'f32[2,32]{1,0:T(2,128)}', space=vmem, size = 0x400, scoped, tag = 'scratch operand']
  %s0 = inlined_call_operand.vmem [shape: bf16[8,2,32], index: 0, kind: input, shape index: {}]
  %s1 = inlined_call_operand.vmem [shape: bf16[32,128], index: 1, kind: input, shape index: {}]
  %s2 = inlined_call_operand.vmem [shape: bf16[32,128], index: 2, kind: input, shape index: {}]
  %s3 = inlined_call_operand.vmem [shape: f32[1,128], index: 3, kind: input, shape index: {}]
  %s4 = inlined_call_operand.vmem [shape: bf16[8,2,32], index: 4, kind: output, shape index: {}]
  %s5 = sld [smem:[#allocation0]]
  $region53: #{lstm_forward.4} parent=0
    _
  %s7 = ssub.s32 1, %s5
  %s8 = scalar_select 0, %s7, %s5
  loop: start=0, step=1, limit=4
  $region2: #{lstm_forward.4} parent=0 // loop_pre_header
    _
  $region3: #{lstm_forward.4} parent=0 // loop_header
    %s10 = sphi 0, %s14
    %p11 = scmp.ge.s32.totalorder %s10, 4
    %s17 = sphi 0, %s29
    %s18 = sphi 0, %s25
    %s19 = sphi 0, %s17
    %s20 = sphi 0, %s18
    %s21 = sphi 0, %s19
    %s22 = sphi 0, %s20
    %s34 = sphi 0, %s36
    %s37 = sphi 0, %s34
    %s38 = sphi 0, %s37
    %s54 = sphi 0, %s38
    %s58 = sphi 0, %s58
    %s60 = sphi 0, %s58
    %s61 = sphi 0, %s60
    %s75 = sphi 0, %s61
    %s79 = sphi 0, %s79
    %s81 = sphi 0, %s79
    %s82 = sphi 0, %s81
    %s96 = sphi 0, %s82
    %s100 = sphi 0, %s100
    %s102 = sphi 0, %s100
    %s103 = sphi 0, %s102
    %s117 = sphi 0, %s103
    %s125 = sphi 0, %s127
    %s128 = sphi 0, %s125
    %s129 = sphi 0, %s128
    %s145 = sphi 0, %s129
  $region4: #{lstm_forward.4} parent=0 // loop_header_branch
    %13 = sbr.rel (%p11) target = $region8
  $region5: #{lstm_forward.4} parent=0 // loop_body
    %s15 = ssub.s32 %s10, 1
    %s16 = ssub.s32 %s10, 2
    %s23 = sadd.s32 1, %s18
    %p24 = scmp.ge.s32.totalorder %s23, 2
    %s25 = scalar_select %p24, 0, %s23
    %s26 = sadd.s32 1, %s17
    %s27 = scalar_select %p24, %s26, %s17
    %p28 = scmp.ge.s32.totalorder %s27, 1
    %s29 = scalar_select %p28, 0, %s27
    %s30 = ssub.s32 %s18, %s25
    %s31 = ssub.s32 %s17, %s29
    %s32 = sor.u32 %s30, %s31
    %p33 = scmp.eq.s32.totalorder %s32, 0
    %s35 = sadd.s32 %s34, 1
    %s36 = scalar_select %p33, %s34, %s35
    %p39 = pneg %p33
    %p40 = scmp.eq.s32.totalorder %s10, 1
    %p41 = por %p39, %p40
    %p42 = scmp.ne.s32.totalorder %s34, %s37
    %p43 = scmp.eq.s32.totalorder %s10, 0
    %p44 = por %p42, %p43
    %p45 = scmp.ne.s32.totalorder %s34, %s37
    %p46 = scmp.eq.s32.totalorder %s15, 1
    %p47 = por %p45, %p46
    %p48 = scmp.ne.s32.totalorder %s37, %s38
    %p49 = scmp.eq.s32.totalorder %s15, 0
    %p50 = por %p48, %p49
    %p51 = scmp.ne.s32.totalorder %s37, %s38
    %p52 = scmp.eq.s32.totalorder %s16, 1
    %p53 = por %p51, %p52
    %p55 = scmp.ne.s32.totalorder %s38, %s54
    %p56 = scmp.eq.s32.totalorder %s16, 0
    %p57 = por %p55, %p56
    %s59 = sadd.s32 %s58, 1
    %p62 = scmp.eq.s32.totalorder %s10, 1
    %p63 = scmp.ne.s32.totalorder %s58, %s60
    %p64 = scmp.eq.s32.totalorder %s10, 0
    %p65 = por %p63, %p64
    %p66 = scmp.ne.s32.totalorder %s58, %s60
    %p67 = scmp.eq.s32.totalorder %s15, 1
    %p68 = por %p66, %p67
    %p69 = scmp.ne.s32.totalorder %s60, %s61
    %p70 = scmp.eq.s32.totalorder %s15, 0
    %p71 = por %p69, %p70
    %p72 = scmp.ne.s32.totalorder %s60, %s61
    %p73 = scmp.eq.s32.totalorder %s16, 1
    %p74 = por %p72, %p73
    %p76 = scmp.ne.s32.totalorder %s61, %s75
    %p77 = scmp.eq.s32.totalorder %s16, 0
    %p78 = por %p76, %p77
    %s80 = sadd.s32 %s79, 1
    %p83 = scmp.eq.s32.totalorder %s10, 1
    %p84 = scmp.ne.s32.totalorder %s79, %s81
    %p85 = scmp.eq.s32.totalorder %s10, 0
    %p86 = por %p84, %p85
    %p87 = scmp.ne.s32.totalorder %s79, %s81
    %p88 = scmp.eq.s32.totalorder %s15, 1
    %p89 = por %p87, %p88
    %p90 = scmp.ne.s32.totalorder %s81, %s82
    %p91 = scmp.eq.s32.totalorder %s15, 0
    %p92 = por %p90, %p91
    %p93 = scmp.ne.s32.totalorder %s81, %s82
    %p94 = scmp.eq.s32.totalorder %s16, 1
    %p95 = por %p93, %p94
    %p97 = scmp.ne.s32.totalorder %s82, %s96
    %p98 = scmp.eq.s32.totalorder %s16, 0
    %p99 = por %p97, %p98
    %s101 = sadd.s32 %s100, 1
    %p104 = scmp.eq.s32.totalorder %s10, 1
    %p105 = scmp.ne.s32.totalorder %s100, %s102
    %p106 = scmp.eq.s32.totalorder %s10, 0
    %p107 = por %p105, %p106
    %p108 = scmp.ne.s32.totalorder %s100, %s102
    %p109 = scmp.eq.s32.totalorder %s15, 1
    %p110 = por %p108, %p109
    %p111 = scmp.ne.s32.totalorder %s102, %s103
    %p112 = scmp.eq.s32.totalorder %s15, 0
    %p113 = por %p111, %p112
    %p114 = scmp.ne.s32.totalorder %s102, %s103
    %p115 = scmp.eq.s32.totalorder %s16, 1
    %p116 = por %p114, %p115
    %p118 = scmp.ne.s32.totalorder %s103, %s117
    %p119 = scmp.eq.s32.totalorder %s16, 0
    %p120 = por %p118, %p119
    %s121 = ssub.s32 %s18, %s25
    %s122 = ssub.s32 %s17, %s29
    %s123 = sor.u32 %s121, %s122
    %p124 = scmp.eq.s32.totalorder %s123, 0
    %s126 = sadd.s32 %s125, 1
    %s127 = scalar_select %p124, %s125, %s126
    %p130 = pneg %p124
    %p131 = scmp.eq.s32.totalorder %s10, 1
    %p132 = por %p130, %p131
    %p133 = scmp.ne.s32.totalorder %s125, %s128
    %p134 = scmp.eq.s32.totalorder %s10, 0
    %p135 = por %p133, %p134
    %p136 = scmp.ne.s32.totalorder %s125, %s128
    %p137 = scmp.eq.s32.totalorder %s15, 1
    %p138 = por %p136, %p137
    %p139 = scmp.ne.s32.totalorder %s128, %s129
    %p140 = scmp.eq.s32.totalorder %s15, 0
    %p141 = por %p139, %p140
    %p142 = scmp.ne.s32.totalorder %s128, %s129
    %p143 = scmp.eq.s32.totalorder %s16, 1
    %p144 = por %p142, %p143
    %p146 = scmp.ne.s32.totalorder %s129, %s145
    %p147 = scmp.eq.s32.totalorder %s16, 0
    %p148 = por %p146, %p147
    %p149 = scmp.le.s32.totalorder 1, %s10
    %p150 = scmp.lt.s32.totalorder %s10, 3
    %p151 = pnand %p149, %p150
    %p152 = pneg %p151
    // Predicated region
    $region9: #{lstm_forward.4} parent=5 // pred_check
      _
    $region10: #{lstm_forward.4} parent=5 // pred_check_branch
      %154 = sbr.rel (%p151) target = $region12
    $region11: #{lstm_forward.4} parent=5 // pred_region
      %s155 = ssub.s32 %s10, 1
      // Predicated region
      $region13: #{lstm_forward.4} parent=11 // pred_check
        %p156 = pneg %p71
      $region14: #{lstm_forward.4} parent=11 // pred_check_branch
        %158 = sbr.rel (%p156) target = $region16
      $region15: #{lstm_forward.4} parent=11 // pred_region
        _
      $region16: #{lstm_forward.4} parent=11 // pred_fallthru
        _
      // Predicated region
      $region17: #{lstm_forward.4} parent=11 // pred_check
        %p159 = pneg %p92
      $region18: #{lstm_forward.4} parent=11 // pred_check_branch
        %161 = sbr.rel (%p159) target = $region20
      $region19: #{lstm_forward.4} parent=11 // pred_region
        _
      $region20: #{lstm_forward.4} parent=11 // pred_fallthru
        _
      // Predicated region
      $region21: #{lstm_forward.4} parent=11 // pred_check
        %p162 = pneg %p113
      $region22: #{lstm_forward.4} parent=11 // pred_check_branch
        %164 = sbr.rel (%p162) target = $region24
      $region23: #{lstm_forward.4} parent=11 // pred_region
        _
      $region24: #{lstm_forward.4} parent=11 // pred_fallthru
        _
    $region12: #{lstm_forward.4} parent=5 // pred_fallthru
      _
    %p165 = scmp.lt.s32.totalorder %s10, 2
    // Predicated region
    $region25: #{lstm_forward.4} parent=5 // pred_check
      %p166 = pneg %p165
    $region26: #{lstm_forward.4} parent=5 // pred_check_branch
      %168 = sbr.rel (%p166) target = $region28
    $region27: #{lstm_forward.4} parent=5 // pred_region
      // Predicated region
      $region29: #{lstm_forward.4} parent=27 // pred_check
        %p169 = pneg %p44
      $region30: #{lstm_forward.4} parent=27 // pred_check_branch
        %171 = sbr.rel (%p169) target = $region32
      $region31: #{lstm_forward.4} parent=27 // pred_region
        %s172 = smul.u32 4, %s18
        %p173 = scmp.lt.s32.totalorder %s172, 7
        %s174 = scalar_select %p173, %s172, 7
        %p175 = scmp.lt.s32.totalorder %s17, 0
        %s176 = scalar_select %p175, %s17, 0
        %s177 = sadd.s32 %s176, %s174
        %s178 = scalar_lea.vmem %s0, %s177
        %s179 = smul.u32 4, %s18
      $region32: #{lstm_forward.4} parent=27 // pred_fallthru
        _
    $region28: #{lstm_forward.4} parent=5 // pred_fallthru
      _
    %p180 = scmp.le.s32.totalorder 1, %s10
    %p181 = scmp.lt.s32.totalorder %s10, 3
    %p182 = pnand %p180, %p181
    %p183 = pneg %p182
    // Predicated region
    $region33: #{lstm_forward.4} parent=5 // pred_check
      _
    $region34: #{lstm_forward.4} parent=5 // pred_check_branch
      %185 = sbr.rel (%p182) target = $region36
    $region35: #{lstm_forward.4} parent=5 // pred_region
      %s186 = ssub.s32 %s10, 1
      %s187 = smul.u32 4, %s20
      %p188 = scmp.lt.s32.totalorder %s187, 7
      %s189 = scalar_select %p188, %s187, 7
      %p190 = scmp.lt.s32.totalorder %s19, 0
      %s191 = scalar_select %p190, %s19, 0
      %s192 = sadd.s32 %s191, %s189
      %s193 = scalar_lea.vmem %s0, %s192
      %p194 = pneg %p50
      %p195 = pneg %p47
      %p196 = pneg %p71
      %p197 = pneg %p68
      %p198 = pneg %p92
      %p199 = pneg %p89
      %p200 = pneg %p113
      %p201 = pneg %p110
      %p202 = pneg %p141
      %p203 = pneg %p138
      %s204 = smul.u32 4, %s20
      %p205 = scmp.lt.s32.totalorder %s204, 7
      %s206 = scalar_select %p205, %s204, 7
      %p207 = scmp.lt.s32.totalorder %s19, 0
      %s208 = scalar_select %p207, %s19, 0
      %s209 = sadd.s32 %s208, %s206
      %s210 = scalar_lea.vmem %s4, %s209
      %s211 = smul.u32 4, %s20
      %p212 = scmp.lt.s32.totalorder %s211, 7
      %s213 = scalar_select %p212, %s211, 7
      %p214 = scmp.lt.s32.totalorder %s19, 0
      %s215 = scalar_select %p214, %s19, 0
      %s216 = sadd.s32 %s215, %s213
      %s217 = scalar_lea.vmem %s0, %s216
      %s218 = smul.u32 4, %s20
      %s219 = smul.u32 4, %s20
      %p220 = scmp.lt.s32.totalorder %s219, 7
      %s221 = scalar_select %p220, %s219, 7
      %p222 = scmp.lt.s32.totalorder %s19, 0
      %s223 = scalar_select %p222, %s19, 0
      %s224 = sadd.s32 %s223, %s221
      %s225 = scalar_lea.vmem %s4, %s224
      %s226 = smul.u32 4, %s20
      %p228 = scmp.eq.s32.totalorder %s20, 0
      // Predicated region
      $region37: #{lstm_forward.4} parent=35 // pred_check
        %p229 = pneg %p228
      $region38: #{lstm_forward.4} parent=35 // pred_check_branch
        %231 = sbr.rel (%p229) target = $region40
      $region39: #{lstm_forward.4} parent=35 // pred_region
        %vm232 = vcmask 253952
        %233 = vst.msk [vmem:[#allocation2] sm:$0x1] %vm232, 0
        %vm234 = vcmask 254976
        %235 = vst.msk [vmem:[#allocation3] sm:$0x3] %vm234, 0.0
      $region40: #{lstm_forward.4} parent=35 // pred_fallthru
        _
      %v236 = vld [vmem:[%s1] sm:$0xf]
      %v237 = vld [vmem:[%s1 + $0x4] sm:$0xf]
      %v238 = vld [vmem:[%s1 + $0x8] sm:$0xf]
      %v239 = vld [vmem:[%s1 + $0xc] sm:$0xf]
      %v240 = vld [vmem:[%s2] sm:$0xf]
      %v241 = vld [vmem:[%s2 + $0x4] sm:$0xf]
      %v242 = vld [vmem:[%s2 + $0x8] sm:$0xf]
      %v243 = vld [vmem:[%s2 + $0xc] sm:$0xf]
      %v244 = vld [vmem:[%s3] sm:$0x1]
      %v246 = vlaneseq
      %v247 = vshrl.u32 %v246, 7
      %v248 = vsub.s32 0, %v247
      %v249 = vrot.slane %v244, %v248
      %v251 = vld [vmem:[#allocation2] sm:$0x1]
      %v252 = vld [vmem:[#allocation3] sm:$0x3]
      %v253 = vld [vmem:[%s217] sm:$0x1]
      %v258 = vunpack.c.l.b16 %v240
      %v259 = vunpack.c.l.b16 %v241
      %v260 = vunpack.c.l.b16 %v242
      %v261 = vunpack.c.l.b16 %v243
      %v262 = vpack.c.b16 %v259, %v258
      %v263 = vpack.c.b16 %v261, %v260
      %vm266 = vcmask 261120
      %v268 = vsel %vm266, %v251, 0
      %270 = vmatprep.subr.bf16.mxu0 0
      %271 = vmatpush1.bf16.msra.mxu0 %v262
      %272 = vmatprep.subr.bf16.mxu0 0
      %273 = vmatpush1.bf16.msra.mxu0 %v263
      %274 = vmatprep.subr.bf16.mxu0 0
      %275 = vmatpush1.bf16.msra.mxu0 0
      %276 = vmatprep.subr.bf16.mxu0 0
      %277 = vmatpush1.bf16.msra.mxu0 0
      %278 = vmatprep.subr.bf16.mxu0 0
      %279 = vmatpush1.bf16.msra.mxu0 0
      %280 = vmatprep.subr.bf16.mxu0 0
      %281 = vmatpush1.bf16.msra.mxu0 0
      %282 = vmatprep.subr.bf16.mxu0 0
      %283 = vmatpush1.bf16.msra.mxu0 0
      %284 = vmatprep.subr.bf16.mxu0 0
      %285 = vmatpush1.bf16.msra.mxu0 0
      %286 = vmatprep.subr.bf16.mxu0 0
      %287 = vmatpush1.bf16.msra.mxu0 0
      %288 = vmatprep.subr.bf16.mxu0 0
      %289 = vmatpush1.bf16.msra.mxu0 0
      %290 = vmatprep.subr.bf16.mxu0 0
      %291 = vmatpush1.bf16.msra.mxu0 0
      %292 = vmatprep.subr.bf16.mxu0 0
      %293 = vmatpush1.bf16.msra.mxu0 0
      %294 = vmatprep.subr.bf16.mxu0 0
      %295 = vmatpush1.bf16.msra.mxu0 0
      %296 = vmatprep.subr.bf16.mxu0 0
      %297 = vmatpush1.bf16.msra.mxu0 0
      %298 = vmatprep.subr.bf16.mxu0 0
      %299 = vmatpush1.bf16.msra.mxu0 0
      %300 = vmatprep.subr.bf16.mxu0 0
      %301 = vmatpush1.bf16.msra.mxu0 0
      %302 = vmatprep.mubr.bf16.mxu0 0
      %303 = vmatmul.mubr.bf16.gmra.mrb[0].mxu0 %v268
      %v304 = vpop.f32.mrb[0].mxu0
      %v305 = vadd.f32 0.0, %v304
      %v306 = vpop.f32.mrb[0].mxu0
      %v307 = vpop.f32.mrb[0].mxu0
      %v308 = vpop.f32.mrb[0].mxu0
      %309 = vdwg.mxu0
      %v314 = vunpack.c.l.b16 %v236
      %v315 = vunpack.c.l.b16 %v237
      %v316 = vunpack.c.l.b16 %v238
      %v317 = vunpack.c.l.b16 %v239
      %v318 = vpack.c.b16 %v315, %v314
      %v319 = vpack.c.b16 %v317, %v316
      %v323 = vsel %vm266, %v253, 0
      %325 = vmatprep.subr.bf16.mxu0 0
      %326 = vmatpush1.bf16.msra.mxu0 %v318
      %327 = vmatprep.subr.bf16.mxu0 0
      %328 = vmatpush1.bf16.msra.mxu0 %v319
      %329 = vmatprep.subr.bf16.mxu0 0
      %330 = vmatpush1.bf16.msra.mxu0 0
      %331 = vmatprep.subr.bf16.mxu0 0
      %332 = vmatpush1.bf16.msra.mxu0 0
      %333 = vmatprep.subr.bf16.mxu0 0
      %334 = vmatpush1.bf16.msra.mxu0 0
      %335 = vmatprep.subr.bf16.mxu0 0
      %336 = vmatpush1.bf16.msra.mxu0 0
      %337 = vmatprep.subr.bf16.mxu0 0
      %338 = vmatpush1.bf16.msra.mxu0 0
      %339 = vmatprep.subr.bf16.mxu0 0
      %340 = vmatpush1.bf16.msra.mxu0 0
      %341 = vmatprep.subr.bf16.mxu0 0
      %342 = vmatpush1.bf16.msra.mxu0 0
      %343 = vmatprep.subr.bf16.mxu0 0
      %344 = vmatpush1.bf16.msra.mxu0 0
      %345 = vmatprep.subr.bf16.mxu0 0
      %346 = vmatpush1.bf16.msra.mxu0 0
      %347 = vmatprep.subr.bf16.mxu0 0
      %348 = vmatpush1.bf16.msra.mxu0 0
      %349 = vmatprep.subr.bf16.mxu0 0
      %350 = vmatpush1.bf16.msra.mxu0 0
      %351 = vmatprep.subr.bf16.mxu0 0
      %352 = vmatpush1.bf16.msra.mxu0 0
      %353 = vmatprep.subr.bf16.mxu0 0
      %354 = vmatpush1.bf16.msra.mxu0 0
      %355 = vmatprep.subr.bf16.mxu0 0
      %356 = vmatpush1.bf16.msra.mxu0 0
      %357 = vmatprep.mubr.bf16.mxu0 0
      %358 = vmatmul.mubr.bf16.gmra.mrb[0].mxu0 %v323
      %v359 = vpop.f32.mrb[0].mxu0
      %v360 = vadd.f32 %v305, %v359
      %v361 = vpop.f32.mrb[0].mxu0
      %v362 = vpop.f32.mrb[0].mxu0
      %v363 = vpop.f32.mrb[0].mxu0
      %364 = vdwg.mxu0
      %v365 = vadd.f32 %v360, %v249
      %v366 = vmul.f32 %v365, 0.5
      %v367 = vtanh.pop %v366
      %v368 = vmul.f32 %v367, 0.5
      %v369 = vadd.f32 %v368, 0.5
      %v370 = vtanh.pop %v365
      %372 = vrot.lane.b32.xlu0 %v252, 32
      %v373 = vpop.permute.xlu0 %372
      %v375 = vmul.f32 %v369, %v373
      %377 = vrot.lane.b32.xlu0 %v370, 64
      %v378 = vpop.permute.xlu0 %377
      %v380 = vmul.f32 %v369, %v378
      %382 = vrot.lane.b32.xlu0 %v380, 32
      %v383 = vpop.permute.xlu0 %382
      %v385 = vadd.f32 %v375, %v383
      %v386 = vtanh.pop %v385
      %388 = vrot.lane.b32.xlu0 %v386, 64
      %v389 = vpop.permute.xlu0 %388
      %v391 = vmul.f32 %v369, %v389
      %v392 = vpack.c.bf16 %v391, %v391
      %v395 = vunpack.c.l.s4 1966171168
      %v396 = vunpack.c.0.s8 %v395
      %v397 = vlaneseq
      %v398 = vshrl.u32 %v397, 7
      %v399 = vsub.s32 %v396, %v398
      %v400 = vrot.slane %v392, %v399
      %v402 = vunpack.c.l.s4 1966171168
      %v403 = vunpack.c.0.s8 %v402
      %v404 = vlaneseq
      %v405 = vshrl.u32 %v404, 7
      %v406 = vsub.s32 %v403, %v405
      %v407 = vrot.slane %v400, %v406
      %408 = vrot.lane.b32.xlu0 %v407, 32
      %v409 = vpop.permute.xlu0 %408
      %vm411 = vcmask 253952
      %412 = vst.msk [vmem:[%s225] sm:$0x1] %vm411, %v409
      %s413 = scalar_lea.vmem %s217, 1
      %v414 = vld [vmem:[%s413] sm:$0x1]
      %415 = vrot.lane.b32.xlu0 %v392, 32
      %v416 = vpop.permute.xlu0 %415
      %v418 = vsel %vm266, %v416, 0
      %420 = vmatprep.subr.bf16.mxu0 0
      %421 = vmatpush1.bf16.msra.mxu0 %v262
      %422 = vmatprep.subr.bf16.mxu0 0
      %423 = vmatpush1.bf16.msra.mxu0 %v263
      %424 = vmatprep.subr.bf16.mxu0 0
      %425 = vmatpush1.bf16.msra.mxu0 0
      %426 = vmatprep.subr.bf16.mxu0 0
      %427 = vmatpush1.bf16.msra.mxu0 0
      %428 = vmatprep.subr.bf16.mxu0 0
      %429 = vmatpush1.bf16.msra.mxu0 0
      %430 = vmatprep.subr.bf16.mxu0 0
      %431 = vmatpush1.bf16.msra.mxu0 0
      %432 = vmatprep.subr.bf16.mxu0 0
      %433 = vmatpush1.bf16.msra.mxu0 0
      %434 = vmatprep.subr.bf16.mxu0 0
      %435 = vmatpush1.bf16.msra.mxu0 0
      %436 = vmatprep.subr.bf16.mxu0 0
      %437 = vmatpush1.bf16.msra.mxu0 0
      %438 = vmatprep.subr.bf16.mxu0 0
      %439 = vmatpush1.bf16.msra.mxu0 0
      %440 = vmatprep.subr.bf16.mxu0 0
      %441 = vmatpush1.bf16.msra.mxu0 0
      %442 = vmatprep.subr.bf16.mxu0 0
      %443 = vmatpush1.bf16.msra.mxu0 0
      %444 = vmatprep.subr.bf16.mxu0 0
      %445 = vmatpush1.bf16.msra.mxu0 0
      %446 = vmatprep.subr.bf16.mxu0 0
      %447 = vmatpush1.bf16.msra.mxu0 0
      %448 = vmatprep.subr.bf16.mxu0 0
      %449 = vmatpush1.bf16.msra.mxu0 0
      %450 = vmatprep.subr.bf16.mxu0 0
      %451 = vmatpush1.bf16.msra.mxu0 0
      %452 = vmatprep.mubr.bf16.mxu0 0
      %453 = vmatmul.mubr.bf16.gmra.mrb[0].mxu0 %v418
      %v454 = vpop.f32.mrb[0].mxu0
      %v455 = vadd.f32 0.0, %v454
      %v456 = vpop.f32.mrb[0].mxu0
      %v457 = vpop.f32.mrb[0].mxu0
      %v458 = vpop.f32.mrb[0].mxu0
      %459 = vdwg.mxu0
      %v461 = vsel %vm266, %v414, 0
      %463 = vmatprep.subr.bf16.mxu0 0
      %464 = vmatpush1.bf16.msra.mxu0 %v318
      %465 = vmatprep.subr.bf16.mxu0 0
      %466 = vmatpush1.bf16.msra.mxu0 %v319
      %467 = vmatprep.subr.bf16.mxu0 0
      %468 = vmatpush1.bf16.msra.mxu0 0
      %469 = vmatprep.subr.bf16.mxu0 0
      %470 = vmatpush1.bf16.msra.mxu0 0
      %471 = vmatprep.subr.bf16.mxu0 0
      %472 = vmatpush1.bf16.msra.mxu0 0
      %473 = vmatprep.subr.bf16.mxu0 0
      %474 = vmatpush1.bf16.msra.mxu0 0
      %475 = vmatprep.subr.bf16.mxu0 0
      %476 = vmatpush1.bf16.msra.mxu0 0
      %477 = vmatprep.subr.bf16.mxu0 0
      %478 = vmatpush1.bf16.msra.mxu0 0
      %479 = vmatprep.subr.bf16.mxu0 0
      %480 = vmatpush1.bf16.msra.mxu0 0
      %481 = vmatprep.subr.bf16.mxu0 0
      %482 = vmatpush1.bf16.msra.mxu0 0
      %483 = vmatprep.subr.bf16.mxu0 0
      %484 = vmatpush1.bf16.msra.mxu0 0
      %485 = vmatprep.subr.bf16.mxu0 0
      %486 = vmatpush1.bf16.msra.mxu0 0
      %487 = vmatprep.subr.bf16.mxu0 0
      %488 = vmatpush1.bf16.msra.mxu0 0
      %489 = vmatprep.subr.bf16.mxu0 0
      %490 = vmatpush1.bf16.msra.mxu0 0
      %491 = vmatprep.subr.bf16.mxu0 0
      %492 = vmatpush1.bf16.msra.mxu0 0
      %493 = vmatprep.subr.bf16.mxu0 0
      %494 = vmatpush1.bf16.msra.mxu0 0
      %495 = vmatprep.mubr.bf16.mxu0 0
      %496 = vmatmul.mubr.bf16.gmra.mrb[0].mxu0 %v461
      %v497 = vpop.f32.mrb[0].mxu0
      %v498 = vadd.f32 %v455, %v497
      %v499 = vpop.f32.mrb[0].mxu0
      %v500 = vpop.f32.mrb[0].mxu0
      %v501 = vpop.f32.mrb[0].mxu0
      %502 = vdwg.mxu0
      %v503 = vadd.f32 %v498, %v249
      %v504 = vmul.f32 %v503, 0.5
      %v505 = vtanh.pop %v504
      %v506 = vmul.f32 %v505, 0.5
      %v507 = vadd.f32 %v506, 0.5
      %v508 = vtanh.pop %v503
      %v509 = vmul.f32 %v507, %v385
      %511 = vrot.lane.b32.xlu0 %v508, 64
      %v512 = vpop.permute.xlu0 %511
      %v514 = vmul.f32 %v507, %v512
      %516 = vrot.lane.b32.xlu0 %v514, 32
      %v517 = vpop.permute.xlu0 %516
      %v519 = vadd.f32 %v509, %v517
      %v520 = vtanh.pop %v519
      %522 = vrot.lane.b32.xlu0 %v520, 64
      %v523 = vpop.permute.xlu0 %522
      %v525 = vmul.f32 %v507, %v523
      %v526 = vpack.c.bf16 %v525, %v525
      %v529 = vunpack.c.l.s4 1966171168
      %v530 = vunpack.c.0.s8 %v529
      %v531 = vlaneseq
      %v532 = vshrl.u32 %v531, 7
      %v533 = vsub.s32 %v530, %v532
      %v534 = vrot.slane %v526, %v533
      %v536 = vunpack.c.l.s4 1966171168
      %v537 = vunpack.c.0.s8 %v536
      %v538 = vlaneseq
      %v539 = vshrl.u32 %v538, 7
      %v540 = vsub.s32 %v537, %v539
      %v541 = vrot.slane %v534, %v540
      %542 = vrot.lane.b32.xlu0 %v541, 32
      %v543 = vpop.permute.xlu0 %542
      %s545 = scalar_lea.vmem %s225, 1
      %546 = vst.msk [vmem:[%s545] sm:$0x1] %vm411, %v543
      %s547 = scalar_lea.vmem %s217, 2
      %v548 = vld [vmem:[%s547] sm:$0x1]
      %549 = vrot.lane.b32.xlu0 %v526, 32
      %v550 = vpop.permute.xlu0 %549
      %v552 = vsel %vm266, %v550, 0
      %554 = vmatprep.subr.bf16.mxu0 0
      %555 = vmatpush1.bf16.msra.mxu0 %v262
      %556 = vmatprep.subr.bf16.mxu0 0
      %557 = vmatpush1.bf16.msra.mxu0 %v263
      %558 = vmatprep.subr.bf16.mxu0 0
      %559 = vmatpush1.bf16.msra.mxu0 0
      %560 = vmatprep.subr.bf16.mxu0 0
      %561 = vmatpush1.bf16.msra.mxu0 0
      %562 = vmatprep.subr.bf16.mxu0 0
      %563 = vmatpush1.bf16.msra.mxu0 0
      %564 = vmatprep.subr.bf16.mxu0 0
      %565 = vmatpush1.bf16.msra.mxu0 0
      %566 = vmatprep.subr.bf16.mxu0 0
      %567 = vmatpush1.bf16.msra.mxu0 0
      %568 = vmatprep.subr.bf16.mxu0 0
      %569 = vmatpush1.bf16.msra.mxu0 0
      %570 = vmatprep.subr.bf16.mxu0 0
      %571 = vmatpush1.bf16.msra.mxu0 0
      %572 = vmatprep.subr.bf16.mxu0 0
      %573 = vmatpush1.bf16.msra.mxu0 0
      %574 = vmatprep.subr.bf16.mxu0 0
      %575 = vmatpush1.bf16.msra.mxu0 0
      %576 = vmatprep.subr.bf16.mxu0 0
      %577 = vmatpush1.bf16.msra.mxu0 0
      %578 = vmatprep.subr.bf16.mxu0 0
      %579 = vmatpush1.bf16.msra.mxu0 0
      %580 = vmatprep.subr.bf16.mxu0 0
      %581 = vmatpush1.bf16.msra.mxu0 0
      %582 = vmatprep.subr.bf16.mxu0 0
      %583 = vmatpush1.bf16.msra.mxu0 0
      %584 = vmatprep.subr.bf16.mxu0 0
      %585 = vmatpush1.bf16.msra.mxu0 0
      %586 = vmatprep.mubr.bf16.mxu0 0
      %587 = vmatmul.mubr.bf16.gmra.mrb[0].mxu0 %v552
      %v588 = vpop.f32.mrb[0].mxu0
      %v589 = vadd.f32 0.0, %v588
      %v590 = vpop.f32.mrb[0].mxu0
      %v591 = vpop.f32.mrb[0].mxu0
      %v592 = vpop.f32.mrb[0].mxu0
      %593 = vdwg.mxu0
      %v595 = vsel %vm266, %v548, 0
      %597 = vmatprep.subr.bf16.mxu0 0
      %598 = vmatpush1.bf16.msra.mxu0 %v318
      %599 = vmatprep.subr.bf16.mxu0 0
      %600 = vmatpush1.bf16.msra.mxu0 %v319
      %601 = vmatprep.subr.bf16.mxu0 0
      %602 = vmatpush1.bf16.msra.mxu0 0
      %603 = vmatprep.subr.bf16.mxu0 0
      %604 = vmatpush1.bf16.msra.mxu0 0
      %605 = vmatprep.subr.bf16.mxu0 0
      %606 = vmatpush1.bf16.msra.mxu0 0
      %607 = vmatprep.subr.bf16.mxu0 0
      %608 = vmatpush1.bf16.msra.mxu0 0
      %609 = vmatprep.subr.bf16.mxu0 0
      %610 = vmatpush1.bf16.msra.mxu0 0
      %611 = vmatprep.subr.bf16.mxu0 0
      %612 = vmatpush1.bf16.msra.mxu0 0
      %613 = vmatprep.subr.bf16.mxu0 0
      %614 = vmatpush1.bf16.msra.mxu0 0
      %615 = vmatprep.subr.bf16.mxu0 0
      %616 = vmatpush1.bf16.msra.mxu0 0
      %617 = vmatprep.subr.bf16.mxu0 0
      %618 = vmatpush1.bf16.msra.mxu0 0
      %619 = vmatprep.subr.bf16.mxu0 0
      %620 = vmatpush1.bf16.msra.mxu0 0
      %621 = vmatprep.subr.bf16.mxu0 0
      %622 = vmatpush1.bf16.msra.mxu0 0
      %623 = vmatprep.subr.bf16.mxu0 0
      %624 = vmatpush1.bf16.msra.mxu0 0
      %625 = vmatprep.subr.bf16.mxu0 0
      %626 = vmatpush1.bf16.msra.mxu0 0
      %627 = vmatprep.subr.bf16.mxu0 0
      %628 = vmatpush1.bf16.msra.mxu0 0
      %629 = vmatprep.mubr.bf16.mxu0 0
      %630 = vmatmul.mubr.bf16.gmra.mrb[0].mxu0 %v595
      %v631 = vpop.f32.mrb[0].mxu0
      %v632 = vadd.f32 %v589, %v631
      %v633 = vpop.f32.mrb[0].mxu0
      %v634 = vpop.f32.mrb[0].mxu0
      %v635 = vpop.f32.mrb[0].mxu0
      %636 = vdwg.mxu0
      %v637 = vadd.f32 %v632, %v249
      %v638 = vmul.f32 %v637, 0.5
      %v639 = vtanh.pop %v638
      %v640 = vmul.f32 %v639, 0.5
      %v641 = vadd.f32 %v640, 0.5
      %v642 = vtanh.pop %v637
      %v643 = vmul.f32 %v641, %v519
      %645 = vrot.lane.b32.xlu0 %v642, 64
      %v646 = vpop.permute.xlu0 %645
      %v648 = vmul.f32 %v641, %v646
      %650 = vrot.lane.b32.xlu0 %v648, 32
      %v651 = vpop.permute.xlu0 %650
      %v653 = vadd.f32 %v643, %v651
      %v654 = vtanh.pop %v653
      %656 = vrot.lane.b32.xlu0 %v654, 64
      %v657 = vpop.permute.xlu0 %656
      %v659 = vmul.f32 %v641, %v657
      %v660 = vpack.c.bf16 %v659, %v659
      %v663 = vunpack.c.l.s4 1966171168
      %v664 = vunpack.c.0.s8 %v663
      %v665 = vlaneseq
      %v666 = vshrl.u32 %v665, 7
      %v667 = vsub.s32 %v664, %v666
      %v668 = vrot.slane %v660, %v667
      %v670 = vunpack.c.l.s4 1966171168
      %v671 = vunpack.c.0.s8 %v670
      %v672 = vlaneseq
      %v673 = vshrl.u32 %v672, 7
      %v674 = vsub.s32 %v671, %v673
      %v675 = vrot.slane %v668, %v674
      %676 = vrot.lane.b32.xlu0 %v675, 32
      %v677 = vpop.permute.xlu0 %676
      %s679 = scalar_lea.vmem %s225, 2
      %680 = vst.msk [vmem:[%s679] sm:$0x1] %vm411, %v677
      %s681 = scalar_lea.vmem %s217, 3
      %v682 = vld [vmem:[%s681] sm:$0x1]
      %683 = vrot.lane.b32.xlu0 %v660, 32
      %v684 = vpop.permute.xlu0 %683
      %v686 = vsel %vm266, %v684, 0
      %688 = vmatprep.subr.bf16.mxu0 0
      %689 = vmatpush1.bf16.msra.mxu0 %v262
      %690 = vmatprep.subr.bf16.mxu0 0
      %691 = vmatpush1.bf16.msra.mxu0 %v263
      %692 = vmatprep.subr.bf16.mxu0 0
      %693 = vmatpush1.bf16.msra.mxu0 0
      %694 = vmatprep.subr.bf16.mxu0 0
      %695 = vmatpush1.bf16.msra.mxu0 0
      %696 = vmatprep.subr.bf16.mxu0 0
      %697 = vmatpush1.bf16.msra.mxu0 0
      %698 = vmatprep.subr.bf16.mxu0 0
      %699 = vmatpush1.bf16.msra.mxu0 0
      %700 = vmatprep.subr.bf16.mxu0 0
      %701 = vmatpush1.bf16.msra.mxu0 0
      %702 = vmatprep.subr.bf16.mxu0 0
      %703 = vmatpush1.bf16.msra.mxu0 0
      %704 = vmatprep.subr.bf16.mxu0 0
      %705 = vmatpush1.bf16.msra.mxu0 0
      %706 = vmatprep.subr.bf16.mxu0 0
      %707 = vmatpush1.bf16.msra.mxu0 0
      %708 = vmatprep.subr.bf16.mxu0 0
      %709 = vmatpush1.bf16.msra.mxu0 0
      %710 = vmatprep.subr.bf16.mxu0 0
      %711 = vmatpush1.bf16.msra.mxu0 0
      %712 = vmatprep.subr.bf16.mxu0 0
      %713 = vmatpush1.bf16.msra.mxu0 0
      %714 = vmatprep.subr.bf16.mxu0 0
      %715 = vmatpush1.bf16.msra.mxu0 0
      %716 = vmatprep.subr.bf16.mxu0 0
      %717 = vmatpush1.bf16.msra.mxu0 0
      %718 = vmatprep.subr.bf16.mxu0 0
      %719 = vmatpush1.bf16.msra.mxu0 0
      %720 = vmatprep.mubr.bf16.mxu0 0
      %721 = vmatmul.mubr.bf16.gmra.mrb[0].mxu0 %v686
      %v722 = vpop.f32.mrb[0].mxu0
      %v723 = vadd.f32 0.0, %v722
      %v724 = vpop.f32.mrb[0].mxu0
      %v725 = vpop.f32.mrb[0].mxu0
      %v726 = vpop.f32.mrb[0].mxu0
      %727 = vdwg.mxu0
      %v729 = vsel %vm266, %v682, 0
      %731 = vmatprep.subr.bf16.mxu0 0
      %732 = vmatpush1.bf16.msra.mxu0 %v318
      %733 = vmatprep.subr.bf16.mxu0 0
      %734 = vmatpush1.bf16.msra.mxu0 %v319
      %735 = vmatprep.subr.bf16.mxu0 0
      %736 = vmatpush1.bf16.msra.mxu0 0
      %737 = vmatprep.subr.bf16.mxu0 0
      %738 = vmatpush1.bf16.msra.mxu0 0
      %739 = vmatprep.subr.bf16.mxu0 0
      %740 = vmatpush1.bf16.msra.mxu0 0
      %741 = vmatprep.subr.bf16.mxu0 0
      %742 = vmatpush1.bf16.msra.mxu0 0
      %743 = vmatprep.subr.bf16.mxu0 0
      %744 = vmatpush1.bf16.msra.mxu0 0
      %745 = vmatprep.subr.bf16.mxu0 0
      %746 = vmatpush1.bf16.msra.mxu0 0
      %747 = vmatprep.subr.bf16.mxu0 0
      %748 = vmatpush1.bf16.msra.mxu0 0
      %749 = vmatprep.subr.bf16.mxu0 0
      %750 = vmatpush1.bf16.msra.mxu0 0
      %751 = vmatprep.subr.bf16.mxu0 0
      %752 = vmatpush1.bf16.msra.mxu0 0
      %753 = vmatprep.subr.bf16.mxu0 0
      %754 = vmatpush1.bf16.msra.mxu0 0
      %755 = vmatprep.subr.bf16.mxu0 0
      %756 = vmatpush1.bf16.msra.mxu0 0
      %757 = vmatprep.subr.bf16.mxu0 0
      %758 = vmatpush1.bf16.msra.mxu0 0
      %759 = vmatprep.subr.bf16.mxu0 0
      %760 = vmatpush1.bf16.msra.mxu0 0
      %761 = vmatprep.subr.bf16.mxu0 0
      %762 = vmatpush1.bf16.msra.mxu0 0
      %763 = vmatprep.mubr.bf16.mxu0 0
      %764 = vmatmul.mubr.bf16.gmra.mrb[0].mxu0 %v729
      %v765 = vpop.f32.mrb[0].mxu0
      %v766 = vadd.f32 %v723, %v765
      %v767 = vpop.f32.mrb[0].mxu0
      %v768 = vpop.f32.mrb[0].mxu0
      %v769 = vpop.f32.mrb[0].mxu0
      %770 = vdwg.mxu0
      %v771 = vadd.f32 %v766, %v249
      %v772 = vmul.f32 %v771, 0.5
      %v773 = vtanh.pop %v772
      %v774 = vmul.f32 %v773, 0.5
      %v775 = vadd.f32 %v774, 0.5
      %v776 = vtanh.pop %v771
      %v777 = vmul.f32 %v775, %v653
      %779 = vrot.lane.b32.xlu0 %v776, 64
      %v780 = vpop.permute.xlu0 %779
      %v782 = vmul.f32 %v775, %v780
      %784 = vrot.lane.b32.xlu0 %v782, 32
      %v785 = vpop.permute.xlu0 %784
      %v787 = vadd.f32 %v777, %v785
      %v788 = vtanh.pop %v787
      %790 = vrot.lane.b32.xlu0 %v788, 64
      %v791 = vpop.permute.xlu0 %790
      %v793 = vmul.f32 %v775, %v791
      %v794 = vpack.c.bf16 %v793, %v793
      %v797 = vunpack.c.l.s4 1966171168
      %v798 = vunpack.c.0.s8 %v797
      %v799 = vlaneseq
      %v800 = vshrl.u32 %v799, 7
      %v801 = vsub.s32 %v798, %v800
      %v802 = vrot.slane %v794, %v801
      %v804 = vunpack.c.l.s4 1966171168
      %v805 = vunpack.c.0.s8 %v804
      %v806 = vlaneseq
      %v807 = vshrl.u32 %v806, 7
      %v808 = vsub.s32 %v805, %v807
      %v809 = vrot.slane %v802, %v808
      %810 = vrot.lane.b32.xlu0 %v809, 32
      %v811 = vpop.permute.xlu0 %810
      %s813 = scalar_lea.vmem %s225, 3
      %814 = vst.msk [vmem:[%s813] sm:$0x1] %vm411, %v811
      %815 = vst.msk [vmem:[#allocation2] sm:$0x1] %vm411, %v811
      %817 = vrot.lane.b32.xlu0 %v787, 96
      %v818 = vpop.permute.xlu0 %817
      %vm820 = vcmask 254976
      %821 = vst.msk [vmem:[#allocation3] sm:$0x3] %vm820, %v818
      %s822 = smul.u32 4, %s20
      %p823 = scmp.lt.s32.totalorder %s822, 7
      %s824 = scalar_select %p823, %s822, 7
      %p825 = scmp.lt.s32.totalorder %s19, 0
      %s826 = scalar_select %p825, %s19, 0
      %s827 = sadd.s32 %s826, %s824
      %s828 = scalar_lea.vmem %s4, %s827
      // Predicated region
      $region41: #{lstm_forward.4} parent=35 // pred_check
        %p829 = pneg %p138
      $region42: #{lstm_forward.4} parent=35 // pred_check_branch
        %831 = sbr.rel (%p829) target = $region44
      $region43: #{lstm_forward.4} parent=35 // pred_region
        %s832 = smul.u32 4, %s20
      $region44: #{lstm_forward.4} parent=35 // pred_fallthru
        _
    $region36: #{lstm_forward.4} parent=5 // pred_fallthru
      _
    %p833 = scmp.le.s32.totalorder 2, %s10
    // Predicated region
    $region45: #{lstm_forward.4} parent=5 // pred_check
      %p834 = pneg %p833
    $region46: #{lstm_forward.4} parent=5 // pred_check_branch
      %836 = sbr.rel (%p834) target = $region48
    $region47: #{lstm_forward.4} parent=5 // pred_region
      %s837 = ssub.s32 %s10, 2
      // Predicated region
      $region49: #{lstm_forward.4} parent=47 // pred_check
        %p838 = pneg %p144
      $region50: #{lstm_forward.4} parent=47 // pred_check_branch
        %840 = sbr.rel (%p838) target = $region52
      $region51: #{lstm_forward.4} parent=47 // pred_region
        %s841 = smul.u32 4, %s22
        %p842 = scmp.lt.s32.totalorder %s841, 7
        %s843 = scalar_select %p842, %s841, 7
        %p844 = scmp.lt.s32.totalorder %s21, 0
        %s845 = scalar_select %p844, %s21, 0
        %s846 = sadd.s32 %s845, %s843
        %s847 = scalar_lea.vmem %s4, %s846
      $region52: #{lstm_forward.4} parent=47 // pred_fallthru
        _
    $region48: #{lstm_forward.4} parent=5 // pred_fallthru
      _
  $region6: #{lstm_forward.4} parent=0 // loop_footer
    %s14 = sadd.s32 1, %s10
  $region7: #{lstm_forward.4} parent=0 // loop_footer_branch
    %9 = sbr.rel target = $region3
  $region8: #{lstm_forward.4} parent=0 // loop_exit
    _

// kernel: lstm_forward.5
$region0: #{lstm_forward.5}
  #allocation0 [shape = 'u32[]', space=smem, size = 0x4, offset = 0x4, fixed_abs, tag = 'smem constant byte address 0x4 - core index']
  #allocation1 [shape = 'u32[144,128]{1,0:T(1,128)}', space=vmem, size = 0x12000, scoped, tag = 'internal scratch']
  %s0 = inlined_call_operand.vmem [shape: bf16[16,32], index: 0, kind: input, shape index: {}]
  %s1 = inlined_call_operand.vmem [shape: bf16[32,3], index: 1, kind: input, shape index: {}]
  %s2 = inlined_call_operand.vmem [shape: f32[1,3], index: 2, kind: input, shape index: {}]
  %s3 = inlined_call_operand.vmem [shape: f32[16,3], index: 3, kind: output, shape index: {}]
  %s4 = sld [smem:[#allocation0]]
  $region22: #{lstm_forward.5} parent=0
    _
  %s6 = ssub.s32 1, %s4
  %s7 = scalar_select 0, %s6, %s4
  // Predicated region
  $region2: #{lstm_forward.5} parent=0 // pred_check
    _
  $region3: #{lstm_forward.5} parent=0 // pred_check_branch
    %9 = sbr.rel (0) target = $region5
  $region4: #{lstm_forward.5} parent=0 // pred_region
    _
  $region5: #{lstm_forward.5} parent=0 // pred_fallthru
    _
  // Predicated region
  $region6: #{lstm_forward.5} parent=0 // pred_check
    _
  $region7: #{lstm_forward.5} parent=0 // pred_check_branch
    %11 = sbr.rel (0) target = $region9
  $region8: #{lstm_forward.5} parent=0 // pred_region
    _
  $region9: #{lstm_forward.5} parent=0 // pred_fallthru
    _
  // Predicated region
  $region10: #{lstm_forward.5} parent=0 // pred_check
    _
  $region11: #{lstm_forward.5} parent=0 // pred_check_branch
    %13 = sbr.rel (0) target = $region13
  $region12: #{lstm_forward.5} parent=0 // pred_region
    _
  $region13: #{lstm_forward.5} parent=0 // pred_fallthru
    _
  %v15 = vld [vmem:[%s0] sm:$0xf]
  %v16 = vld [vmem:[%s0 + $0x4] sm:$0xf]
  %v17 = vld [vmem:[%s1] sm:$0xf]
  %v18 = vld [vmem:[%s1 + $0x4] sm:$0xf]
  %v19 = vld [vmem:[%s1 + $0x8] sm:$0xf]
  %v20 = vld [vmem:[%s1 + $0xc] sm:$0xf]
  %v21 = vld [vmem:[%s2] sm:$0x1]
  %v23 = vlaneseq
  %v24 = vshrl.u32 %v23, 7
  %v25 = vsub.s32 0, %v24
  %v26 = vrot.slane %v21, %v25
  %v30 = vunpack.c.l.b16 %v15
  %v31 = vunpack.c.l.b16 %v16
  %v32 = vpack.c.b16 %v31, %v30
  %v37 = vunpack.c.l.b16 %v17
  %v38 = vunpack.c.l.b16 %v18
  %v39 = vunpack.c.l.b16 %v19
  %v40 = vunpack.c.l.b16 %v20
  %v41 = vpack.c.b16 %v38, %v37
  %v42 = vpack.c.b16 %v40, %v39
  %vm45 = vcmask 261120
  %v47 = vsel %vm45, %v32, 0
  %49 = vmatprep.subr.bf16.mxu0 0
  %50 = vmatpush1.bf16.msra.mxu0 %v41
  %51 = vmatprep.subr.bf16.mxu0 0
  %52 = vmatpush1.bf16.msra.mxu0 %v42
  %53 = vmatprep.subr.bf16.mxu0 0
  %54 = vmatpush1.bf16.msra.mxu0 0
  %55 = vmatprep.subr.bf16.mxu0 0
  %56 = vmatpush1.bf16.msra.mxu0 0
  %57 = vmatprep.subr.bf16.mxu0 0
  %58 = vmatpush1.bf16.msra.mxu0 0
  %59 = vmatprep.subr.bf16.mxu0 0
  %60 = vmatpush1.bf16.msra.mxu0 0
  %61 = vmatprep.subr.bf16.mxu0 0
  %62 = vmatpush1.bf16.msra.mxu0 0
  %63 = vmatprep.subr.bf16.mxu0 0
  %64 = vmatpush1.bf16.msra.mxu0 0
  %65 = vmatprep.subr.bf16.mxu0 0
  %66 = vmatpush1.bf16.msra.mxu0 0
  %67 = vmatprep.subr.bf16.mxu0 0
  %68 = vmatpush1.bf16.msra.mxu0 0
  %69 = vmatprep.subr.bf16.mxu0 0
  %70 = vmatpush1.bf16.msra.mxu0 0
  %71 = vmatprep.subr.bf16.mxu0 0
  %72 = vmatpush1.bf16.msra.mxu0 0
  %73 = vmatprep.subr.bf16.mxu0 0
  %74 = vmatpush1.bf16.msra.mxu0 0
  %75 = vmatprep.subr.bf16.mxu0 0
  %76 = vmatpush1.bf16.msra.mxu0 0
  %77 = vmatprep.subr.bf16.mxu0 0
  %78 = vmatpush1.bf16.msra.mxu0 0
  %79 = vmatprep.subr.bf16.mxu0 0
  %80 = vmatpush1.bf16.msra.mxu0 0
  %81 = vmatprep.mubr.bf16.mxu0 0
  %82 = vmatmul.mubr.bf16.gmra.mrb[0].mxu0 %v47
  %v83 = vpop.f32.mrb[0].mxu0
  %v84 = vadd.f32 %v26, %v83
  %v85 = vpop.f32.mrb[0].mxu0
  %v86 = vpop.f32.mrb[0].mxu0
  %v87 = vadd.f32 %v26, %v86
  %v88 = vpop.f32.mrb[0].mxu0
  %89 = vdwg.mxu0
  %v90 = vtanh.pop %v84
  %v91 = vtanh.pop %v87
  %vm92 = vcmask 23552
  %93 = vst.msk [vmem:[%s3] sm:$0xff] %vm92, %v90
  %94 = vst.msk [vmem:[%s3 + $0x8] sm:$0xff] %vm92, %v91
  // Predicated region
  $region14: #{lstm_forward.5} parent=0 // pred_check
    _
  $region15: #{lstm_forward.5} parent=0 // pred_check_branch
    %96 = sbr.rel (0) target = $region17
  $region16: #{lstm_forward.5} parent=0 // pred_region
    _
  $region17: #{lstm_forward.5} parent=0 // pred_fallthru
    _
  // Predicated region
  $region18: #{lstm_forward.5} parent=0 // pred_check
    _
  $region19: #{lstm_forward.5} parent=0 // pred_check_branch
    %98 = sbr.rel (0) target = $region21
  $region20: #{lstm_forward.5} parent=0 // pred_region
    _
  $region21: #{lstm_forward.5} parent=0 // pred_fallthru
    _

// kernel: lstm_forward.3
$region0: #{lstm_forward.3}
  #allocation0 [shape = 'u32[]', space=smem, size = 0x4, offset = 0x4, fixed_abs, tag = 'smem constant byte address 0x4 - core index']
  #allocation1 [shape = 'u32[144,128]{1,0:T(1,128)}', space=vmem, size = 0x12000, scoped, tag = 'internal scratch']
  #allocation2 [shape = 'bf16[2,32]{1,0:T(2,128)(2,1)}', space=vmem, size = 0x200, scoped, tag = 'scratch operand']
  #allocation3 [shape = 'f32[2,32]{1,0:T(2,128)}', space=vmem, size = 0x400, scoped, tag = 'scratch operand']
  %s0 = inlined_call_operand.vmem [shape: f32[8,2,4], index: 0, kind: input, shape index: {}]
  %s1 = inlined_call_operand.vmem [shape: bf16[4,128], index: 1, kind: input, shape index: {}]
  %s2 = inlined_call_operand.vmem [shape: bf16[32,128], index: 2, kind: input, shape index: {}]
  %s3 = inlined_call_operand.vmem [shape: f32[1,128], index: 3, kind: input, shape index: {}]
  %s4 = inlined_call_operand.vmem [shape: bf16[8,2,32], index: 4, kind: output, shape index: {}]
  %s5 = sld [smem:[#allocation0]]
  $region53: #{lstm_forward.3} parent=0
    _
  %s7 = ssub.s32 1, %s5
  %s8 = scalar_select 0, %s7, %s5
  loop: start=0, step=1, limit=4
  $region2: #{lstm_forward.3} parent=0 // loop_pre_header
    _
  $region3: #{lstm_forward.3} parent=0 // loop_header
    %s10 = sphi 0, %s14
    %p11 = scmp.ge.s32.totalorder %s10, 4
    %s17 = sphi 0, %s29
    %s18 = sphi 0, %s25
    %s19 = sphi 0, %s17
    %s20 = sphi 0, %s18
    %s21 = sphi 0, %s19
    %s22 = sphi 0, %s20
    %s34 = sphi 0, %s36
    %s37 = sphi 0, %s34
    %s38 = sphi 0, %s37
    %s54 = sphi 0, %s38
    %s58 = sphi 0, %s58
    %s60 = sphi 0, %s58
    %s61 = sphi 0, %s60
    %s75 = sphi 0, %s61
    %s79 = sphi 0, %s79
    %s81 = sphi 0, %s79
    %s82 = sphi 0, %s81
    %s96 = sphi 0, %s82
    %s100 = sphi 0, %s100
    %s102 = sphi 0, %s100
    %s103 = sphi 0, %s102
    %s117 = sphi 0, %s103
    %s125 = sphi 0, %s127
    %s128 = sphi 0, %s125
    %s129 = sphi 0, %s128
    %s145 = sphi 0, %s129
  $region4: #{lstm_forward.3} parent=0 // loop_header_branch
    %13 = sbr.rel (%p11) target = $region8
  $region5: #{lstm_forward.3} parent=0 // loop_body
    %s15 = ssub.s32 %s10, 1
    %s16 = ssub.s32 %s10, 2
    %s23 = sadd.s32 1, %s18
    %p24 = scmp.ge.s32.totalorder %s23, 2
    %s25 = scalar_select %p24, 0, %s23
    %s26 = sadd.s32 1, %s17
    %s27 = scalar_select %p24, %s26, %s17
    %p28 = scmp.ge.s32.totalorder %s27, 1
    %s29 = scalar_select %p28, 0, %s27
    %s30 = ssub.s32 %s18, %s25
    %s31 = ssub.s32 %s17, %s29
    %s32 = sor.u32 %s30, %s31
    %p33 = scmp.eq.s32.totalorder %s32, 0
    %s35 = sadd.s32 %s34, 1
    %s36 = scalar_select %p33, %s34, %s35
    %p39 = pneg %p33
    %p40 = scmp.eq.s32.totalorder %s10, 1
    %p41 = por %p39, %p40
    %p42 = scmp.ne.s32.totalorder %s34, %s37
    %p43 = scmp.eq.s32.totalorder %s10, 0
    %p44 = por %p42, %p43
    %p45 = scmp.ne.s32.totalorder %s34, %s37
    %p46 = scmp.eq.s32.totalorder %s15, 1
    %p47 = por %p45, %p46
    %p48 = scmp.ne.s32.totalorder %s37, %s38
    %p49 = scmp.eq.s32.totalorder %s15, 0
    %p50 = por %p48, %p49
    %p51 = scmp.ne.s32.totalorder %s37, %s38
    %p52 = scmp.eq.s32.totalorder %s16, 1
    %p53 = por %p51, %p52
    %p55 = scmp.ne.s32.totalorder %s38, %s54
    %p56 = scmp.eq.s32.totalorder %s16, 0
    %p57 = por %p55, %p56
    %s59 = sadd.s32 %s58, 1
    %p62 = scmp.eq.s32.totalorder %s10, 1
    %p63 = scmp.ne.s32.totalorder %s58, %s60
    %p64 = scmp.eq.s32.totalorder %s10, 0
    %p65 = por %p63, %p64
    %p66 = scmp.ne.s32.totalorder %s58, %s60
    %p67 = scmp.eq.s32.totalorder %s15, 1
    %p68 = por %p66, %p67
    %p69 = scmp.ne.s32.totalorder %s60, %s61
    %p70 = scmp.eq.s32.totalorder %s15, 0
    %p71 = por %p69, %p70
    %p72 = scmp.ne.s32.totalorder %s60, %s61
    %p73 = scmp.eq.s32.totalorder %s16, 1
    %p74 = por %p72, %p73
    %p76 = scmp.ne.s32.totalorder %s61, %s75
    %p77 = scmp.eq.s32.totalorder %s16, 0
    %p78 = por %p76, %p77
    %s80 = sadd.s32 %s79, 1
    %p83 = scmp.eq.s32.totalorder %s10, 1
    %p84 = scmp.ne.s32.totalorder %s79, %s81
    %p85 = scmp.eq.s32.totalorder %s10, 0
    %p86 = por %p84, %p85
    %p87 = scmp.ne.s32.totalorder %s79, %s81
    %p88 = scmp.eq.s32.totalorder %s15, 1
    %p89 = por %p87, %p88
    %p90 = scmp.ne.s32.totalorder %s81, %s82
    %p91 = scmp.eq.s32.totalorder %s15, 0
    %p92 = por %p90, %p91
    %p93 = scmp.ne.s32.totalorder %s81, %s82
    %p94 = scmp.eq.s32.totalorder %s16, 1
    %p95 = por %p93, %p94
    %p97 = scmp.ne.s32.totalorder %s82, %s96
    %p98 = scmp.eq.s32.totalorder %s16, 0
    %p99 = por %p97, %p98
    %s101 = sadd.s32 %s100, 1
    %p104 = scmp.eq.s32.totalorder %s10, 1
    %p105 = scmp.ne.s32.totalorder %s100, %s102
    %p106 = scmp.eq.s32.totalorder %s10, 0
    %p107 = por %p105, %p106
    %p108 = scmp.ne.s32.totalorder %s100, %s102
    %p109 = scmp.eq.s32.totalorder %s15, 1
    %p110 = por %p108, %p109
    %p111 = scmp.ne.s32.totalorder %s102, %s103
    %p112 = scmp.eq.s32.totalorder %s15, 0
    %p113 = por %p111, %p112
    %p114 = scmp.ne.s32.totalorder %s102, %s103
    %p115 = scmp.eq.s32.totalorder %s16, 1
    %p116 = por %p114, %p115
    %p118 = scmp.ne.s32.totalorder %s103, %s117
    %p119 = scmp.eq.s32.totalorder %s16, 0
    %p120 = por %p118, %p119
    %s121 = ssub.s32 %s18, %s25
    %s122 = ssub.s32 %s17, %s29
    %s123 = sor.u32 %s121, %s122
    %p124 = scmp.eq.s32.totalorder %s123, 0
    %s126 = sadd.s32 %s125, 1
    %s127 = scalar_select %p124, %s125, %s126
    %p130 = pneg %p124
    %p131 = scmp.eq.s32.totalorder %s10, 1
    %p132 = por %p130, %p131
    %p133 = scmp.ne.s32.totalorder %s125, %s128
    %p134 = scmp.eq.s32.totalorder %s10, 0
    %p135 = por %p133, %p134
    %p136 = scmp.ne.s32.totalorder %s125, %s128
    %p137 = scmp.eq.s32.totalorder %s15, 1
    %p138 = por %p136, %p137
    %p139 = scmp.ne.s32.totalorder %s128, %s129
    %p140 = scmp.eq.s32.totalorder %s15, 0
    %p141 = por %p139, %p140
    %p142 = scmp.ne.s32.totalorder %s128, %s129
    %p143 = scmp.eq.s32.totalorder %s16, 1
    %p144 = por %p142, %p143
    %p146 = scmp.ne.s32.totalorder %s129, %s145
    %p147 = scmp.eq.s32.totalorder %s16, 0
    %p148 = por %p146, %p147
    %p149 = scmp.le.s32.totalorder 1, %s10
    %p150 = scmp.lt.s32.totalorder %s10, 3
    %p151 = pnand %p149, %p150
    %p152 = pneg %p151
    // Predicated region
    $region9: #{lstm_forward.3} parent=5 // pred_check
      _
    $region10: #{lstm_forward.3} parent=5 // pred_check_branch
      %154 = sbr.rel (%p151) target = $region12
    $region11: #{lstm_forward.3} parent=5 // pred_region
      %s155 = ssub.s32 %s10, 1
      // Predicated region
      $region13: #{lstm_forward.3} parent=11 // pred_check
        %p156 = pneg %p71
      $region14: #{lstm_forward.3} parent=11 // pred_check_branch
        %158 = sbr.rel (%p156) target = $region16
      $region15: #{lstm_forward.3} parent=11 // pred_region
        _
      $region16: #{lstm_forward.3} parent=11 // pred_fallthru
        _
      // Predicated region
      $region17: #{lstm_forward.3} parent=11 // pred_check
        %p159 = pneg %p92
      $region18: #{lstm_forward.3} parent=11 // pred_check_branch
        %161 = sbr.rel (%p159) target = $region20
      $region19: #{lstm_forward.3} parent=11 // pred_region
        _
      $region20: #{lstm_forward.3} parent=11 // pred_fallthru
        _
      // Predicated region
      $region21: #{lstm_forward.3} parent=11 // pred_check
        %p162 = pneg %p113
      $region22: #{lstm_forward.3} parent=11 // pred_check_branch
        %164 = sbr.rel (%p162) target = $region24
      $region23: #{lstm_forward.3} parent=11 // pred_region
        _
      $region24: #{lstm_forward.3} parent=11 // pred_fallthru
        _
    $region12: #{lstm_forward.3} parent=5 // pred_fallthru
      _
    %p165 = scmp.lt.s32.totalorder %s10, 2
    // Predicated region
    $region25: #{lstm_forward.3} parent=5 // pred_check
      %p166 = pneg %p165
    $region26: #{lstm_forward.3} parent=5 // pred_check_branch
      %168 = sbr.rel (%p166) target = $region28
    $region27: #{lstm_forward.3} parent=5 // pred_region
      // Predicated region
      $region29: #{lstm_forward.3} parent=27 // pred_check
        %p169 = pneg %p44
      $region30: #{lstm_forward.3} parent=27 // pred_check_branch
        %171 = sbr.rel (%p169) target = $region32
      $region31: #{lstm_forward.3} parent=27 // pred_region
        %s172 = smul.u32 4, %s18
        %p173 = scmp.lt.s32.totalorder %s172, 7
        %s174 = scalar_select %p173, %s172, 7
        %p175 = scmp.lt.s32.totalorder %s17, 0
        %s176 = scalar_select %p175, %s17, 0
        %s177 = sadd.s32 %s176, %s174
        %s178 = smul.addr %s177, 2
        %s179 = scalar_lea.vmem %s0, %s178
        %s180 = smul.u32 4, %s18
      $region32: #{lstm_forward.3} parent=27 // pred_fallthru
        _
    $region28: #{lstm_forward.3} parent=5 // pred_fallthru
      _
    %p181 = scmp.le.s32.totalorder 1, %s10
    %p182 = scmp.lt.s32.totalorder %s10, 3
    %p183 = pnand %p181, %p182
    %p184 = pneg %p183
    // Predicated region
    $region33: #{lstm_forward.3} parent=5 // pred_check
      _
    $region34: #{lstm_forward.3} parent=5 // pred_check_branch
      %186 = sbr.rel (%p183) target = $region36
    $region35: #{lstm_forward.3} parent=5 // pred_region
      %s187 = ssub.s32 %s10, 1
      %s188 = smul.u32 4, %s20
      %p189 = scmp.lt.s32.totalorder %s188, 7
      %s190 = scalar_select %p189, %s188, 7
      %p191 = scmp.lt.s32.totalorder %s19, 0
      %s192 = scalar_select %p191, %s19, 0
      %s193 = sadd.s32 %s192, %s190
      %s194 = smul.addr %s193, 2
      %s195 = scalar_lea.vmem %s0, %s194
      %p196 = pneg %p50
      %p197 = pneg %p47
      %p198 = pneg %p71
      %p199 = pneg %p68
      %p200 = pneg %p92
      %p201 = pneg %p89
      %p202 = pneg %p113
      %p203 = pneg %p110
      %p204 = pneg %p141
      %p205 = pneg %p138
      %s206 = smul.u32 4, %s20
      %p207 = scmp.lt.s32.totalorder %s206, 7
      %s208 = scalar_select %p207, %s206, 7
      %p209 = scmp.lt.s32.totalorder %s19, 0
      %s210 = scalar_select %p209, %s19, 0
      %s211 = sadd.s32 %s210, %s208
      %s212 = scalar_lea.vmem %s4, %s211
      %s213 = smul.u32 4, %s20
      %p214 = scmp.lt.s32.totalorder %s213, 7
      %s215 = scalar_select %p214, %s213, 7
      %p216 = scmp.lt.s32.totalorder %s19, 0
      %s217 = scalar_select %p216, %s19, 0
      %s218 = sadd.s32 %s217, %s215
      %s219 = smul.addr %s218, 2
      %s220 = scalar_lea.vmem %s0, %s219
      %s221 = smul.u32 4, %s20
      %s222 = smul.u32 4, %s20
      %p223 = scmp.lt.s32.totalorder %s222, 7
      %s224 = scalar_select %p223, %s222, 7
      %p225 = scmp.lt.s32.totalorder %s19, 0
      %s226 = scalar_select %p225, %s19, 0
      %s227 = sadd.s32 %s226, %s224
      %s228 = scalar_lea.vmem %s4, %s227
      %s229 = smul.u32 4, %s20
      %p231 = scmp.eq.s32.totalorder %s20, 0
      // Predicated region
      $region37: #{lstm_forward.3} parent=35 // pred_check
        %p232 = pneg %p231
      $region38: #{lstm_forward.3} parent=35 // pred_check_branch
        %234 = sbr.rel (%p232) target = $region40
      $region39: #{lstm_forward.3} parent=35 // pred_region
        %vm235 = vcmask 253952
        %236 = vst.msk [vmem:[#allocation2] sm:$0x1] %vm235, 0
        %vm237 = vcmask 254976
        %238 = vst.msk [vmem:[#allocation3] sm:$0x3] %vm237, 0.0
      $region40: #{lstm_forward.3} parent=35 // pred_fallthru
        _
      %v239 = vld [vmem:[%s1] sm:$0x3]
      %v240 = vld [vmem:[%s2] sm:$0xf]
      %v241 = vld [vmem:[%s2 + $0x4] sm:$0xf]
      %v242 = vld [vmem:[%s2 + $0x8] sm:$0xf]
      %v243 = vld [vmem:[%s2 + $0xc] sm:$0xf]
      %v244 = vld [vmem:[%s3] sm:$0x1]
      %v246 = vlaneseq
      %v247 = vshrl.u32 %v246, 7
      %v248 = vsub.s32 0, %v247
      %v249 = vrot.slane %v244, %v248
      %v251 = vld [vmem:[#allocation2] sm:$0x1]
      %v252 = vld [vmem:[#allocation3] sm:$0x3]
      %v253 = vld [vmem:[%s220] sm:$0x3]
      %v254 = vpack.c.bf16 %v253, %v253
      %v259 = vunpack.c.l.b16 %v240
      %v260 = vunpack.c.l.b16 %v241
      %v261 = vunpack.c.l.b16 %v242
      %v262 = vunpack.c.l.b16 %v243
      %v263 = vpack.c.b16 %v260, %v259
      %v264 = vpack.c.b16 %v262, %v261
      %vm267 = vcmask 261120
      %v269 = vsel %vm267, %v251, 0
      %271 = vmatprep.subr.bf16.mxu0 0
      %272 = vmatpush1.bf16.msra.mxu0 %v263
      %273 = vmatprep.subr.bf16.mxu0 0
      %274 = vmatpush1.bf16.msra.mxu0 %v264
      %275 = vmatprep.subr.bf16.mxu0 0
      %276 = vmatpush1.bf16.msra.mxu0 0
      %277 = vmatprep.subr.bf16.mxu0 0
      %278 = vmatpush1.bf16.msra.mxu0 0
      %279 = vmatprep.subr.bf16.mxu0 0
      %280 = vmatpush1.bf16.msra.mxu0 0
      %281 = vmatprep.subr.bf16.mxu0 0
      %282 = vmatpush1.bf16.msra.mxu0 0
      %283 = vmatprep.subr.bf16.mxu0 0
      %284 = vmatpush1.bf16.msra.mxu0 0
      %285 = vmatprep.subr.bf16.mxu0 0
      %286 = vmatpush1.bf16.msra.mxu0 0
      %287 = vmatprep.subr.bf16.mxu0 0
      %288 = vmatpush1.bf16.msra.mxu0 0
      %289 = vmatprep.subr.bf16.mxu0 0
      %290 = vmatpush1.bf16.msra.mxu0 0
      %291 = vmatprep.subr.bf16.mxu0 0
      %292 = vmatpush1.bf16.msra.mxu0 0
      %293 = vmatprep.subr.bf16.mxu0 0
      %294 = vmatpush1.bf16.msra.mxu0 0
      %295 = vmatprep.subr.bf16.mxu0 0
      %296 = vmatpush1.bf16.msra.mxu0 0
      %297 = vmatprep.subr.bf16.mxu0 0
      %298 = vmatpush1.bf16.msra.mxu0 0
      %299 = vmatprep.subr.bf16.mxu0 0
      %300 = vmatpush1.bf16.msra.mxu0 0
      %301 = vmatprep.subr.bf16.mxu0 0
      %302 = vmatpush1.bf16.msra.mxu0 0
      %303 = vmatprep.mubr.bf16.mxu0 0
      %304 = vmatmul.mubr.bf16.gmra.mrb[0].mxu0 %v269
      %v305 = vpop.f32.mrb[0].mxu0
      %v306 = vadd.f32 0.0, %v305
      %v307 = vpop.f32.mrb[0].mxu0
      %v308 = vpop.f32.mrb[0].mxu0
      %v309 = vpop.f32.mrb[0].mxu0
      %310 = vdwg.mxu0
      %vm311 = vcmask 31744
      %v313 = vsel %vm311, %v254, 0
      %vm315 = vcmask 1041408
      %v317 = vsel %vm315, %v239, 0
      %319 = vmatprep.subr.bf16.mxu0 0
      %320 = vmatpush1.bf16.msra.mxu0 %v317
      %321 = vmatprep.subr.bf16.mxu0 0
      %322 = vmatpush1.bf16.msra.mxu0 0
      %323 = vmatprep.subr.bf16.mxu0 0
      %324 = vmatpush1.bf16.msra.mxu0 0
      %325 = vmatprep.subr.bf16.mxu0 0
      %326 = vmatpush1.bf16.msra.mxu0 0
      %327 = vmatprep.subr.bf16.mxu0 0
      %328 = vmatpush1.bf16.msra.mxu0 0
      %329 = vmatprep.subr.bf16.mxu0 0
      %330 = vmatpush1.bf16.msra.mxu0 0
      %331 = vmatprep.subr.bf16.mxu0 0
      %332 = vmatpush1.bf16.msra.mxu0 0
      %333 = vmatprep.subr.bf16.mxu0 0
      %334 = vmatpush1.bf16.msra.mxu0 0
      %335 = vmatprep.subr.bf16.mxu0 0
      %336 = vmatpush1.bf16.msra.mxu0 0
      %337 = vmatprep.subr.bf16.mxu0 0
      %338 = vmatpush1.bf16.msra.mxu0 0
      %339 = vmatprep.subr.bf16.mxu0 0
      %340 = vmatpush1.bf16.msra.mxu0 0
      %341 = vmatprep.subr.bf16.mxu0 0
      %342 = vmatpush1.bf16.msra.mxu0 0
      %343 = vmatprep.subr.bf16.mxu0 0
      %344 = vmatpush1.bf16.msra.mxu0 0
      %345 = vmatprep.subr.bf16.mxu0 0
      %346 = vmatpush1.bf16.msra.mxu0 0
      %347 = vmatprep.subr.bf16.mxu0 0
      %348 = vmatpush1.bf16.msra.mxu0 0
      %349 = vmatprep.subr.bf16.mxu0 0
      %350 = vmatpush1.bf16.msra.mxu0 0
      %351 = vmatprep.mubr.bf16.mxu0 0
      %352 = vmatmul.mubr.bf16.gmra.mrb[0].mxu0 %v313
      %v353 = vpop.f32.mrb[0].mxu0
      %v354 = vadd.f32 %v306, %v353
      %v355 = vpop.f32.mrb[0].mxu0
      %v356 = vpop.f32.mrb[0].mxu0
      %v357 = vpop.f32.mrb[0].mxu0
      %358 = vdwg.mxu0
      %v359 = vadd.f32 %v354, %v249
      %v360 = vmul.f32 %v359, 0.5
      %v361 = vtanh.pop %v360
      %v362 = vmul.f32 %v361, 0.5
      %v363 = vadd.f32 %v362, 0.5
      %v364 = vtanh.pop %v359
      %366 = vrot.lane.b32.xlu0 %v252, 32
      %v367 = vpop.permute.xlu0 %366
      %v369 = vmul.f32 %v363, %v367
      %371 = vrot.lane.b32.xlu0 %v364, 64
      %v372 = vpop.permute.xlu0 %371
      %v374 = vmul.f32 %v363, %v372
      %376 = vrot.lane.b32.xlu0 %v374, 32
      %v377 = vpop.permute.xlu0 %376
      %v379 = vadd.f32 %v369, %v377
      %v380 = vtanh.pop %v379
      %382 = vrot.lane.b32.xlu0 %v380, 64
      %v383 = vpop.permute.xlu0 %382
      %v385 = vmul.f32 %v363, %v383
      %v386 = vpack.c.bf16 %v385, %v385
      %v389 = vunpack.c.l.s4 1966171168
      %v390 = vunpack.c.0.s8 %v389
      %v391 = vlaneseq
      %v392 = vshrl.u32 %v391, 7
      %v393 = vsub.s32 %v390, %v392
      %v394 = vrot.slane %v386, %v393
      %v396 = vunpack.c.l.s4 1966171168
      %v397 = vunpack.c.0.s8 %v396
      %v398 = vlaneseq
      %v399 = vshrl.u32 %v398, 7
      %v400 = vsub.s32 %v397, %v399
      %v401 = vrot.slane %v394, %v400
      %402 = vrot.lane.b32.xlu0 %v401, 32
      %v403 = vpop.permute.xlu0 %402
      %vm405 = vcmask 253952
      %406 = vst.msk [vmem:[%s228] sm:$0x1] %vm405, %v403
      %s407 = scalar_lea.vmem %s220, 2
      %v408 = vld [vmem:[%s407] sm:$0x3]
      %v409 = vpack.c.bf16 %v408, %v408
      %410 = vrot.lane.b32.xlu0 %v386, 32
      %v411 = vpop.permute.xlu0 %410
      %v413 = vsel %vm267, %v411, 0
      %415 = vmatprep.subr.bf16.mxu0 0
      %416 = vmatpush1.bf16.msra.mxu0 %v263
      %417 = vmatprep.subr.bf16.mxu0 0
      %418 = vmatpush1.bf16.msra.mxu0 %v264
      %419 = vmatprep.subr.bf16.mxu0 0
      %420 = vmatpush1.bf16.msra.mxu0 0
      %421 = vmatprep.subr.bf16.mxu0 0
      %422 = vmatpush1.bf16.msra.mxu0 0
      %423 = vmatprep.subr.bf16.mxu0 0
      %424 = vmatpush1.bf16.msra.mxu0 0
      %425 = vmatprep.subr.bf16.mxu0 0
      %426 = vmatpush1.bf16.msra.mxu0 0
      %427 = vmatprep.subr.bf16.mxu0 0
      %428 = vmatpush1.bf16.msra.mxu0 0
      %429 = vmatprep.subr.bf16.mxu0 0
      %430 = vmatpush1.bf16.msra.mxu0 0
      %431 = vmatprep.subr.bf16.mxu0 0
      %432 = vmatpush1.bf16.msra.mxu0 0
      %433 = vmatprep.subr.bf16.mxu0 0
      %434 = vmatpush1.bf16.msra.mxu0 0
      %435 = vmatprep.subr.bf16.mxu0 0
      %436 = vmatpush1.bf16.msra.mxu0 0
      %437 = vmatprep.subr.bf16.mxu0 0
      %438 = vmatpush1.bf16.msra.mxu0 0
      %439 = vmatprep.subr.bf16.mxu0 0
      %440 = vmatpush1.bf16.msra.mxu0 0
      %441 = vmatprep.subr.bf16.mxu0 0
      %442 = vmatpush1.bf16.msra.mxu0 0
      %443 = vmatprep.subr.bf16.mxu0 0
      %444 = vmatpush1.bf16.msra.mxu0 0
      %445 = vmatprep.subr.bf16.mxu0 0
      %446 = vmatpush1.bf16.msra.mxu0 0
      %447 = vmatprep.mubr.bf16.mxu0 0
      %448 = vmatmul.mubr.bf16.gmra.mrb[0].mxu0 %v413
      %v449 = vpop.f32.mrb[0].mxu0
      %v450 = vadd.f32 0.0, %v449
      %v451 = vpop.f32.mrb[0].mxu0
      %v452 = vpop.f32.mrb[0].mxu0
      %v453 = vpop.f32.mrb[0].mxu0
      %454 = vdwg.mxu0
      %v456 = vsel %vm311, %v409, 0
      %458 = vmatprep.subr.bf16.mxu0 0
      %459 = vmatpush1.bf16.msra.mxu0 %v317
      %460 = vmatprep.subr.bf16.mxu0 0
      %461 = vmatpush1.bf16.msra.mxu0 0
      %462 = vmatprep.subr.bf16.mxu0 0
      %463 = vmatpush1.bf16.msra.mxu0 0
      %464 = vmatprep.subr.bf16.mxu0 0
      %465 = vmatpush1.bf16.msra.mxu0 0
      %466 = vmatprep.subr.bf16.mxu0 0
      %467 = vmatpush1.bf16.msra.mxu0 0
      %468 = vmatprep.subr.bf16.mxu0 0
      %469 = vmatpush1.bf16.msra.mxu0 0
      %470 = vmatprep.subr.bf16.mxu0 0
      %471 = vmatpush1.bf16.msra.mxu0 0
      %472 = vmatprep.subr.bf16.mxu0 0
      %473 = vmatpush1.bf16.msra.mxu0 0
      %474 = vmatprep.subr.bf16.mxu0 0
      %475 = vmatpush1.bf16.msra.mxu0 0
      %476 = vmatprep.subr.bf16.mxu0 0
      %477 = vmatpush1.bf16.msra.mxu0 0
      %478 = vmatprep.subr.bf16.mxu0 0
      %479 = vmatpush1.bf16.msra.mxu0 0
      %480 = vmatprep.subr.bf16.mxu0 0
      %481 = vmatpush1.bf16.msra.mxu0 0
      %482 = vmatprep.subr.bf16.mxu0 0
      %483 = vmatpush1.bf16.msra.mxu0 0
      %484 = vmatprep.subr.bf16.mxu0 0
      %485 = vmatpush1.bf16.msra.mxu0 0
      %486 = vmatprep.subr.bf16.mxu0 0
      %487 = vmatpush1.bf16.msra.mxu0 0
      %488 = vmatprep.subr.bf16.mxu0 0
      %489 = vmatpush1.bf16.msra.mxu0 0
      %490 = vmatprep.mubr.bf16.mxu0 0
      %491 = vmatmul.mubr.bf16.gmra.mrb[0].mxu0 %v456
      %v492 = vpop.f32.mrb[0].mxu0
      %v493 = vadd.f32 %v450, %v492
      %v494 = vpop.f32.mrb[0].mxu0
      %v495 = vpop.f32.mrb[0].mxu0
      %v496 = vpop.f32.mrb[0].mxu0
      %497 = vdwg.mxu0
      %v498 = vadd.f32 %v493, %v249
      %v499 = vmul.f32 %v498, 0.5
      %v500 = vtanh.pop %v499
      %v501 = vmul.f32 %v500, 0.5
      %v502 = vadd.f32 %v501, 0.5
      %v503 = vtanh.pop %v498
      %v504 = vmul.f32 %v502, %v379
      %506 = vrot.lane.b32.xlu0 %v503, 64
      %v507 = vpop.permute.xlu0 %506
      %v509 = vmul.f32 %v502, %v507
      %511 = vrot.lane.b32.xlu0 %v509, 32
      %v512 = vpop.permute.xlu0 %511
      %v514 = vadd.f32 %v504, %v512
      %v515 = vtanh.pop %v514
      %517 = vrot.lane.b32.xlu0 %v515, 64
      %v518 = vpop.permute.xlu0 %517
      %v520 = vmul.f32 %v502, %v518
      %v521 = vpack.c.bf16 %v520, %v520
      %v524 = vunpack.c.l.s4 1966171168
      %v525 = vunpack.c.0.s8 %v524
      %v526 = vlaneseq
      %v527 = vshrl.u32 %v526, 7
      %v528 = vsub.s32 %v525, %v527
      %v529 = vrot.slane %v521, %v528
      %v531 = vunpack.c.l.s4 1966171168
      %v532 = vunpack.c.0.s8 %v531
      %v533 = vlaneseq
      %v534 = vshrl.u32 %v533, 7
      %v535 = vsub.s32 %v532, %v534
      %v536 = vrot.slane %v529, %v535
      %537 = vrot.lane.b32.xlu0 %v536, 32
      %v538 = vpop.permute.xlu0 %537
      %s540 = scalar_lea.vmem %s228, 1
      %541 = vst.msk [vmem:[%s540] sm:$0x1] %vm405, %v538
      %s542 = scalar_lea.vmem %s220, 4
      %v543 = vld [vmem:[%s542] sm:$0x3]
      %v544 = vpack.c.bf16 %v543, %v543
      %545 = vrot.lane.b32.xlu0 %v521, 32
      %v546 = vpop.permute.xlu0 %545
      %v548 = vsel %vm267, %v546, 0
      %550 = vmatprep.subr.bf16.mxu0 0
      %551 = vmatpush1.bf16.msra.mxu0 %v263
      %552 = vmatprep.subr.bf16.mxu0 0
      %553 = vmatpush1.bf16.msra.mxu0 %v264
      %554 = vmatprep.subr.bf16.mxu0 0
      %555 = vmatpush1.bf16.msra.mxu0 0
      %556 = vmatprep.subr.bf16.mxu0 0
      %557 = vmatpush1.bf16.msra.mxu0 0
      %558 = vmatprep.subr.bf16.mxu0 0
      %559 = vmatpush1.bf16.msra.mxu0 0
      %560 = vmatprep.subr.bf16.mxu0 0
      %561 = vmatpush1.bf16.msra.mxu0 0
      %562 = vmatprep.subr.bf16.mxu0 0
      %563 = vmatpush1.bf16.msra.mxu0 0
      %564 = vmatprep.subr.bf16.mxu0 0
      %565 = vmatpush1.bf16.msra.mxu0 0
      %566 = vmatprep.subr.bf16.mxu0 0
      %567 = vmatpush1.bf16.msra.mxu0 0
      %568 = vmatprep.subr.bf16.mxu0 0
      %569 = vmatpush1.bf16.msra.mxu0 0
      %570 = vmatprep.subr.bf16.mxu0 0
      %571 = vmatpush1.bf16.msra.mxu0 0
      %572 = vmatprep.subr.bf16.mxu0 0
      %573 = vmatpush1.bf16.msra.mxu0 0
      %574 = vmatprep.subr.bf16.mxu0 0
      %575 = vmatpush1.bf16.msra.mxu0 0
      %576 = vmatprep.subr.bf16.mxu0 0
      %577 = vmatpush1.bf16.msra.mxu0 0
      %578 = vmatprep.subr.bf16.mxu0 0
      %579 = vmatpush1.bf16.msra.mxu0 0
      %580 = vmatprep.subr.bf16.mxu0 0
      %581 = vmatpush1.bf16.msra.mxu0 0
      %582 = vmatprep.mubr.bf16.mxu0 0
      %583 = vmatmul.mubr.bf16.gmra.mrb[0].mxu0 %v548
      %v584 = vpop.f32.mrb[0].mxu0
      %v585 = vadd.f32 0.0, %v584
      %v586 = vpop.f32.mrb[0].mxu0
      %v587 = vpop.f32.mrb[0].mxu0
      %v588 = vpop.f32.mrb[0].mxu0
      %589 = vdwg.mxu0
      %v591 = vsel %vm311, %v544, 0
      %593 = vmatprep.subr.bf16.mxu0 0
      %594 = vmatpush1.bf16.msra.mxu0 %v317
      %595 = vmatprep.subr.bf16.mxu0 0
      %596 = vmatpush1.bf16.msra.mxu0 0
      %597 = vmatprep.subr.bf16.mxu0 0
      %598 = vmatpush1.bf16.msra.mxu0 0
      %599 = vmatprep.subr.bf16.mxu0 0
      %600 = vmatpush1.bf16.msra.mxu0 0
      %601 = vmatprep.subr.bf16.mxu0 0
      %602 = vmatpush1.bf16.msra.mxu0 0
      %603 = vmatprep.subr.bf16.mxu0 0
      %604 = vmatpush1.bf16.msra.mxu0 0
      %605 = vmatprep.subr.bf16.mxu0 0
      %606 = vmatpush1.bf16.msra.mxu0 0
      %607 = vmatprep.subr.bf16.mxu0 0
      %608 = vmatpush1.bf16.msra.mxu0 0
      %609 = vmatprep.subr.bf16.mxu0 0
      %610 = vmatpush1.bf16.msra.mxu0 0
      %611 = vmatprep.subr.bf16.mxu0 0
      %612 = vmatpush1.bf16.msra.mxu0 0
      %613 = vmatprep.subr.bf16.mxu0 0
      %614 = vmatpush1.bf16.msra.mxu0 0
      %615 = vmatprep.subr.bf16.mxu0 0
      %616 = vmatpush1.bf16.msra.mxu0 0
      %617 = vmatprep.subr.bf16.mxu0 0
      %618 = vmatpush1.bf16.msra.mxu0 0
      %619 = vmatprep.subr.bf16.mxu0 0
      %620 = vmatpush1.bf16.msra.mxu0 0
      %621 = vmatprep.subr.bf16.mxu0 0
      %622 = vmatpush1.bf16.msra.mxu0 0
      %623 = vmatprep.subr.bf16.mxu0 0
      %624 = vmatpush1.bf16.msra.mxu0 0
      %625 = vmatprep.mubr.bf16.mxu0 0
      %626 = vmatmul.mubr.bf16.gmra.mrb[0].mxu0 %v591
      %v627 = vpop.f32.mrb[0].mxu0
      %v628 = vadd.f32 %v585, %v627
      %v629 = vpop.f32.mrb[0].mxu0
      %v630 = vpop.f32.mrb[0].mxu0
      %v631 = vpop.f32.mrb[0].mxu0
      %632 = vdwg.mxu0
      %v633 = vadd.f32 %v628, %v249
      %v634 = vmul.f32 %v633, 0.5
      %v635 = vtanh.pop %v634
      %v636 = vmul.f32 %v635, 0.5
      %v637 = vadd.f32 %v636, 0.5
      %v638 = vtanh.pop %v633
      %v639 = vmul.f32 %v637, %v514
      %641 = vrot.lane.b32.xlu0 %v638, 64
      %v642 = vpop.permute.xlu0 %641
      %v644 = vmul.f32 %v637, %v642
      %646 = vrot.lane.b32.xlu0 %v644, 32
      %v647 = vpop.permute.xlu0 %646
      %v649 = vadd.f32 %v639, %v647
      %v650 = vtanh.pop %v649
      %652 = vrot.lane.b32.xlu0 %v650, 64
      %v653 = vpop.permute.xlu0 %652
      %v655 = vmul.f32 %v637, %v653
      %v656 = vpack.c.bf16 %v655, %v655
      %v659 = vunpack.c.l.s4 1966171168
      %v660 = vunpack.c.0.s8 %v659
      %v661 = vlaneseq
      %v662 = vshrl.u32 %v661, 7
      %v663 = vsub.s32 %v660, %v662
      %v664 = vrot.slane %v656, %v663
      %v666 = vunpack.c.l.s4 1966171168
      %v667 = vunpack.c.0.s8 %v666
      %v668 = vlaneseq
      %v669 = vshrl.u32 %v668, 7
      %v670 = vsub.s32 %v667, %v669
      %v671 = vrot.slane %v664, %v670
      %672 = vrot.lane.b32.xlu0 %v671, 32
      %v673 = vpop.permute.xlu0 %672
      %s675 = scalar_lea.vmem %s228, 2
      %676 = vst.msk [vmem:[%s675] sm:$0x1] %vm405, %v673
      %s677 = scalar_lea.vmem %s220, 6
      %v678 = vld [vmem:[%s677] sm:$0x3]
      %v679 = vpack.c.bf16 %v678, %v678
      %680 = vrot.lane.b32.xlu0 %v656, 32
      %v681 = vpop.permute.xlu0 %680
      %v683 = vsel %vm267, %v681, 0
      %685 = vmatprep.subr.bf16.mxu0 0
      %686 = vmatpush1.bf16.msra.mxu0 %v263
      %687 = vmatprep.subr.bf16.mxu0 0
      %688 = vmatpush1.bf16.msra.mxu0 %v264
      %689 = vmatprep.subr.bf16.mxu0 0
      %690 = vmatpush1.bf16.msra.mxu0 0
      %691 = vmatprep.subr.bf16.mxu0 0
      %692 = vmatpush1.bf16.msra.mxu0 0
      %693 = vmatprep.subr.bf16.mxu0 0
      %694 = vmatpush1.bf16.msra.mxu0 0
      %695 = vmatprep.subr.bf16.mxu0 0
      %696 = vmatpush1.bf16.msra.mxu0 0
      %697 = vmatprep.subr.bf16.mxu0 0
      %698 = vmatpush1.bf16.msra.mxu0 0
      %699 = vmatprep.subr.bf16.mxu0 0
      %700 = vmatpush1.bf16.msra.mxu0 0
      %701 = vmatprep.subr.bf16.mxu0 0
      %702 = vmatpush1.bf16.msra.mxu0 0
      %703 = vmatprep.subr.bf16.mxu0 0
      %704 = vmatpush1.bf16.msra.mxu0 0
      %705 = vmatprep.subr.bf16.mxu0 0
      %706 = vmatpush1.bf16.msra.mxu0 0
      %707 = vmatprep.subr.bf16.mxu0 0
      %708 = vmatpush1.bf16.msra.mxu0 0
      %709 = vmatprep.subr.bf16.mxu0 0
      %710 = vmatpush1.bf16.msra.mxu0 0
      %711 = vmatprep.subr.bf16.mxu0 0
      %712 = vmatpush1.bf16.msra.mxu0 0
      %713 = vmatprep.subr.bf16.mxu0 0
      %714 = vmatpush1.bf16.msra.mxu0 0
      %715 = vmatprep.subr.bf16.mxu0 0
      %716 = vmatpush1.bf16.msra.mxu0 0
      %717 = vmatprep.mubr.bf16.mxu0 0
      %718 = vmatmul.mubr.bf16.gmra.mrb[0].mxu0 %v683
      %v719 = vpop.f32.mrb[0].mxu0
      %v720 = vadd.f32 0.0, %v719
      %v721 = vpop.f32.mrb[0].mxu0
      %v722 = vpop.f32.mrb[0].mxu0
      %v723 = vpop.f32.mrb[0].mxu0
      %724 = vdwg.mxu0
      %v726 = vsel %vm311, %v679, 0
      %728 = vmatprep.subr.bf16.mxu0 0
      %729 = vmatpush1.bf16.msra.mxu0 %v317
      %730 = vmatprep.subr.bf16.mxu0 0
      %731 = vmatpush1.bf16.msra.mxu0 0
      %732 = vmatprep.subr.bf16.mxu0 0
      %733 = vmatpush1.bf16.msra.mxu0 0
      %734 = vmatprep.subr.bf16.mxu0 0
      %735 = vmatpush1.bf16.msra.mxu0 0
      %736 = vmatprep.subr.bf16.mxu0 0
      %737 = vmatpush1.bf16.msra.mxu0 0
      %738 = vmatprep.subr.bf16.mxu0 0
      %739 = vmatpush1.bf16.msra.mxu0 0
      %740 = vmatprep.subr.bf16.mxu0 0
      %741 = vmatpush1.bf16.msra.mxu0 0
      %742 = vmatprep.subr.bf16.mxu0 0
      %743 = vmatpush1.bf16.msra.mxu0 0
      %744 = vmatprep.subr.bf16.mxu0 0
      %745 = vmatpush1.bf16.msra.mxu0 0
      %746 = vmatprep.subr.bf16.mxu0 0
      %747 = vmatpush1.bf16.msra.mxu0 0
      %748 = vmatprep.subr.bf16.mxu0 0
      %749 = vmatpush1.bf16.msra.mxu0 0
      %750 = vmatprep.subr.bf16.mxu0 0
      %751 = vmatpush1.bf16.msra.mxu0 0
      %752 = vmatprep.subr.bf16.mxu0 0
      %753 = vmatpush1.bf16.msra.mxu0 0
      %754 = vmatprep.subr.bf16.mxu0 0
      %755 = vmatpush1.bf16.msra.mxu0 0
      %756 = vmatprep.subr.bf16.mxu0 0
      %757 = vmatpush1.bf16.msra.mxu0 0
      %758 = vmatprep.subr.bf16.mxu0 0
      %759 = vmatpush1.bf16.msra.mxu0 0
      %760 = vmatprep.mubr.bf16.mxu0 0
      %761 = vmatmul.mubr.bf16.gmra.mrb[0].mxu0 %v726
      %v762 = vpop.f32.mrb[0].mxu0
      %v763 = vadd.f32 %v720, %v762
      %v764 = vpop.f32.mrb[0].mxu0
      %v765 = vpop.f32.mrb[0].mxu0
      %v766 = vpop.f32.mrb[0].mxu0
      %767 = vdwg.mxu0
      %v768 = vadd.f32 %v763, %v249
      %v769 = vmul.f32 %v768, 0.5
      %v770 = vtanh.pop %v769
      %v771 = vmul.f32 %v770, 0.5
      %v772 = vadd.f32 %v771, 0.5
      %v773 = vtanh.pop %v768
      %v774 = vmul.f32 %v772, %v649
      %776 = vrot.lane.b32.xlu0 %v773, 64
      %v777 = vpop.permute.xlu0 %776
      %v779 = vmul.f32 %v772, %v777
      %781 = vrot.lane.b32.xlu0 %v779, 32
      %v782 = vpop.permute.xlu0 %781
      %v784 = vadd.f32 %v774, %v782
      %v785 = vtanh.pop %v784
      %787 = vrot.lane.b32.xlu0 %v785, 64
      %v788 = vpop.permute.xlu0 %787
      %v790 = vmul.f32 %v772, %v788
      %v791 = vpack.c.bf16 %v790, %v790
      %v794 = vunpack.c.l.s4 1966171168
      %v795 = vunpack.c.0.s8 %v794
      %v796 = vlaneseq
      %v797 = vshrl.u32 %v796, 7
      %v798 = vsub.s32 %v795, %v797
      %v799 = vrot.slane %v791, %v798
      %v801 = vunpack.c.l.s4 1966171168
      %v802 = vunpack.c.0.s8 %v801
      %v803 = vlaneseq
      %v804 = vshrl.u32 %v803, 7
      %v805 = vsub.s32 %v802, %v804
      %v806 = vrot.slane %v799, %v805
      %807 = vrot.lane.b32.xlu0 %v806, 32
      %v808 = vpop.permute.xlu0 %807
      %s810 = scalar_lea.vmem %s228, 3
      %811 = vst.msk [vmem:[%s810] sm:$0x1] %vm405, %v808
      %812 = vst.msk [vmem:[#allocation2] sm:$0x1] %vm405, %v808
      %814 = vrot.lane.b32.xlu0 %v784, 96
      %v815 = vpop.permute.xlu0 %814
      %vm817 = vcmask 254976
      %818 = vst.msk [vmem:[#allocation3] sm:$0x3] %vm817, %v815
      %s819 = smul.u32 4, %s20
      %p820 = scmp.lt.s32.totalorder %s819, 7
      %s821 = scalar_select %p820, %s819, 7
      %p822 = scmp.lt.s32.totalorder %s19, 0
      %s823 = scalar_select %p822, %s19, 0
      %s824 = sadd.s32 %s823, %s821
      %s825 = scalar_lea.vmem %s4, %s824
      // Predicated region
      $region41: #{lstm_forward.3} parent=35 // pred_check
        %p826 = pneg %p138
      $region42: #{lstm_forward.3} parent=35 // pred_check_branch
        %828 = sbr.rel (%p826) target = $region44
      $region43: #{lstm_forward.3} parent=35 // pred_region
        %s829 = smul.u32 4, %s20
      $region44: #{lstm_forward.3} parent=35 // pred_fallthru
        _
    $region36: #{lstm_forward.3} parent=5 // pred_fallthru
      _
    %p830 = scmp.le.s32.totalorder 2, %s10
    // Predicated region
    $region45: #{lstm_forward.3} parent=5 // pred_check
      %p831 = pneg %p830
    $region46: #{lstm_forward.3} parent=5 // pred_check_branch
      %833 = sbr.rel (%p831) target = $region48
    $region47: #{lstm_forward.3} parent=5 // pred_region
      %s834 = ssub.s32 %s10, 2
      // Predicated region
      $region49: #{lstm_forward.3} parent=47 // pred_check
        %p835 = pneg %p144
      $region50: #{lstm_forward.3} parent=47 // pred_check_branch
        %837 = sbr.rel (%p835) target = $region52
      $region51: #{lstm_forward.3} parent=47 // pred_region
        %s838 = smul.u32 4, %s22
        %p839 = scmp.lt.s32.totalorder %s838, 7
        %s840 = scalar_select %p839, %s838, 7
        %p841 = scmp.lt.s32.totalorder %s21, 0
        %s842 = scalar_select %p841, %s21, 0
        %s843 = sadd.s32 %s842, %s840
        %s844 = scalar_lea.vmem %s4, %s843
      $region52: #{lstm_forward.3} parent=47 // pred_fallthru
        _
    $region48: #{lstm_forward.3} parent=5 // pred_fallthru
      _
  $region6: #{lstm_forward.3} parent=0 // loop_footer
    %s14 = sadd.s32 1, %s10
  $region7: #{lstm_forward.3} parent=0 // loop_footer_branch
    %9 = sbr.rel target = $region3
  $region8: #{lstm_forward.3} parent=0 // loop_exit
    _

</llo_original>
